<compile_context>
chip_gen: v7x
topology: tpu7x:2x2x1
jax: 0.10.0
libtpu: 0.0.40
codegen_flags: <defaults>
</compile_context>

<pallas_src>
import functools

import jax
import jax.numpy as jnp
from jax.experimental import pallas as pl
from jax.experimental.pallas import tpu as pltpu


# --------------------------------------------------------------------------- #
# Kernels
# --------------------------------------------------------------------------- #
def _sage_layer1_kernel(a_ref, x_ref, w1_ref, b1_ref, w2n_ref,
                        h_ref, yn_ref, dinv_ref,
                        acc_ref, deg_ref, *, bm, bk):
    """h = relu([ (A@x)/deg , x ] @ [W1n;W1s] + b1);  yn = h @ W2n;  dinv = 1/deg."""
    i = pl.program_id(0)
    k = pl.program_id(1)

    @pl.when(k == 0)
    def _():
        acc_ref[...] = jnp.zeros_like(acc_ref)
        deg_ref[...] = jnp.zeros_like(deg_ref)

    a = a_ref[...]                                        # (bm, bk) bf16 edge counts
    off = pl.multiple_of(k * bk, bk)
    xk = x_ref[pl.ds(off, bk), :]                         # K chunk of VMEM-resident x
    # Aggregation on the MXU: bf16 operands, f32 accumulate.
    acc_ref[...] += jnp.dot(a, xk, preferred_element_type=jnp.float32)
    # Degree row-sum: VPU cast + XLU reduce, both idle in this DMA/MXU-bound kernel.
    deg_ref[...] += jnp.sum(a.astype(jnp.float32), axis=-1, keepdims=True)

    @pl.when(k == pl.num_programs(1) - 1)
    def _():
        dinv = 1.0 / jnp.maximum(deg_ref[...], 1.0)
        dinv_ref[...] = dinv
        agg = acc_ref[...] * dinv                          # exact f32 mean scaling
        row = pl.multiple_of(i * bm, bm)
        x_self = x_ref[pl.ds(row, bm), :].astype(jnp.float32)
        # Single 2*cin-deep contraction against the fused [W1_neigh; W1_self] weight.
        h = (jnp.dot(jnp.concatenate([agg, x_self], axis=-1), w1_ref[...],
                     preferred_element_type=jnp.float32) + b1_ref[...])
        h = jnp.maximum(h, 0.0)                            # ReLU; dropout(p=0) = identity
        h_ref[...] = h
        # Pre-multiply by W2_neigh so layer-2's N^2 matmul contracts over out_c.
        yn_ref[...] = jnp.dot(h, w2n_ref[...],
                              preferred_element_type=jnp.float32).astype(yn_ref.dtype)


def _sage_layer2_kernel(a_ref, yn_ref, hm_ref, dinv_ref, w2s_ref, b2_ref,
                        out_ref, acc_ref, *, bk, out_c):
    """z = (A @ yn) * dinv + h @ W2s + b2;  out = log_softmax(z)."""
    k = pl.program_id(1)

    @pl.when(k == 0)
    def _():
        acc_ref[...] = jnp.zeros_like(acc_ref)

    off = pl.multiple_of(k * bk, bk)
    acc_ref[...] += jnp.dot(a_ref[...], yn_ref[pl.ds(off, bk), :],
                            preferred_element_type=jnp.float32)

    @pl.when(k == pl.num_programs(1) - 1)
    def _():
        z = (acc_ref[...] * dinv_ref[...]
             + jnp.dot(hm_ref[...], w2s_ref[...], preferred_element_type=jnp.float32)
             + b2_ref[...])
        # Keep lane-padded columns finite but negligible in the softmax.
        col = jax.lax.broadcasted_iota(jnp.int32, z.shape, 1)
        z = jnp.where(col < out_c, z, -1e30)
        m = jnp.max(z, axis=-1, keepdims=True)
        e = jnp.exp(z - m)
        lse = jnp.log(jnp.sum(e, axis=-1, keepdims=True)) + m
        out_ref[...] = z - lse


# --------------------------------------------------------------------------- #
# Wrapper
# --------------------------------------------------------------------------- #
def _round_up(v, m):
    return ((v + m - 1) // m) * m


def _pad_to(a, shape):
    return jnp.pad(a, [(0, s - d) for s, d in zip(shape, a.shape)])


def sage_forward(x, edge_index, params, *, bm=256, bk=1024):
    """x: (N, Cin) float32 node features; edge_index: (2, E) int32 (src, dst)."""
    n, cin = x.shape
    w1n, w1s, b1, w2n, w2s, b2 = params
    hid, out_c = w1n.shape[1], w2n.shape[1]

    # Row-tile bm, reduction-tile bk (bm | bk_req, so the final n_pad divides both).
    n_pad = _round_up(n, bm)
    bk = min(bk, n_pad)
    n_pad = _round_up(n_pad, bk)
    cin_pad = _round_up(cin, 128)
    hid_pad = _round_up(hid, 128)
    out_pad = _round_up(out_c, 128)

    # --- dense mean-aggregation operand, built directly in bf16 (O(E) scatter) -----
    # bf16 represents small integer edge counts exactly (multiplicities <= 256).
    src, dst = edge_index[0], edge_index[1]
    a_bf16 = jnp.zeros((n_pad, n_pad), jnp.bfloat16).at[dst, src].add(1.0)

    # --- padded / fused operands ----------------------------------------------------
    x_bf16 = _pad_to(x, (n_pad, cin_pad)).astype(jnp.bfloat16)
    w1_cat = jnp.concatenate([_pad_to(w1n, (cin_pad, hid_pad)),
                              _pad_to(w1s, (cin_pad, hid_pad))], axis=0)  # (2*cin, hid)
    b1_p = _pad_to(b1, (1, hid_pad))
    w2n_p = _pad_to(w2n, (hid_pad, out_pad))
    w2s_p = _pad_to(w2s, (hid_pad, out_pad))
    b2_p = _pad_to(b2, (1, out_pad))

    grid = (n_pad // bm, n_pad // bk)
    cparams = pltpu.CompilerParams(
        dimension_semantics=("parallel", "arbitrary"),
        vmem_limit_bytes=48 * 1024 * 1024,
    )

    # --- layer 1 (also emits yn = h @ W2_neigh and dinv = 1/deg) --------------------
    h, yn, dinv = pl.pallas_call(
        functools.partial(_sage_layer1_kernel, bm=bm, bk=bk),
        out_shape=(jax.ShapeDtypeStruct((n_pad, hid_pad), jnp.float32),
                   jax.ShapeDtypeStruct((n_pad, out_pad), jnp.bfloat16),
                   jax.ShapeDtypeStruct((n_pad, 1), jnp.float32)),
        grid_spec=pltpu.PrefetchScalarGridSpec(
            num_scalar_prefetch=0,
            grid=grid,
            in_specs=[
                pl.BlockSpec((bm, bk), lambda i, k: (i, k)),              # A (bf16)
                pl.BlockSpec((n_pad, cin_pad), lambda i, k: (0, 0)),      # x resident
                pl.BlockSpec((2 * cin_pad, hid_pad), lambda i, k: (0, 0)),  # [W1n;W1s]
                pl.BlockSpec((1, hid_pad), lambda i, k: (0, 0)),          # b1
                pl.BlockSpec((hid_pad, out_pad), lambda i, k: (0, 0)),    # W2_neigh
            ],
            out_specs=[
                pl.BlockSpec((bm, hid_pad), lambda i, k: (i, 0)),         # h
                pl.BlockSpec((bm, out_pad), lambda i, k: (i, 0)),         # yn = h @ W2n
                pl.BlockSpec((bm, 1), lambda i, k: (i, 0)),               # 1/deg
            ],
            scratch_shapes=[pltpu.VMEM((bm, cin_pad), jnp.float32),       # agg acc
                            pltpu.VMEM((bm, 1), jnp.float32)],            # deg acc
        ),
        compiler_params=cparams,
    )(a_bf16, x_bf16, w1_cat, b1_p, w2n_p)

    # --- layer 2 + log_softmax -------------------------------------------------------
    out = pl.pallas_call(
        functools.partial(_sage_layer2_kernel, bk=bk, out_c=out_c),
        out_shape=jax.ShapeDtypeStruct((n_pad, out_pad), jnp.float32),
        grid_spec=pltpu.PrefetchScalarGridSpec(
            num_scalar_prefetch=0,
            grid=grid,
            in_specs=[
                pl.BlockSpec((bm, bk), lambda i, k: (i, k)),              # A (bf16)
                pl.BlockSpec((n_pad, out_pad), lambda i, k: (0, 0)),      # yn resident
                pl.BlockSpec((bm, hid_pad), lambda i, k: (i, 0)),         # h_i (self)
                pl.BlockSpec((bm, 1), lambda i, k: (i, 0)),               # 1/deg
                pl.BlockSpec((hid_pad, out_pad), lambda i, k: (0, 0)),    # W2_self
                pl.BlockSpec((1, out_pad), lambda i, k: (0, 0)),          # b2
            ],
            out_specs=pl.BlockSpec((bm, out_pad), lambda i, k: (i, 0)),
            scratch_shapes=[pltpu.VMEM((bm, out_pad), jnp.float32)],
        ),
        compiler_params=cparams,
    )(a_bf16, yn, h, dinv, w2s_p, b2_p)

    return out[:n, :out_c]


# --------------------------------------------------------------------------- #
# Params + reference
# --------------------------------------------------------------------------- #
def init_params(key, in_c, hid_c, out_c):
    ks = jax.random.split(key, 4)

    def glorot(k, fan_in, fan_out):
        lim = (6.0 / (fan_in + fan_out)) ** 0.5
        return jax.random.uniform(k, (fan_in, fan_out), jnp.float32, -lim, lim)

    w1n = glorot(ks[0], in_c, hid_c)      # conv1 neighbor (lin_l)
    w1s = glorot(ks[1], in_c, hid_c)      # conv1 self     (lin_r)
    b1 = jnp.zeros((1, hid_c), jnp.float32)
    w2n = glorot(ks[2], hid_c, out_c)
    w2s = glorot(ks[3], hid_c, out_c)
    b2 = jnp.zeros((1, out_c), jnp.float32)
    return (w1n, w1s, b1, w2n, w2s, b2)


def sage_reference(x, edge_index, params):
    n = x.shape[0]
    src, dst = edge_index[0], edge_index[1]
    adj = jnp.zeros((n, n), jnp.float32).at[dst, src].add(1.0)
    deg = jnp.clip(jnp.sum(adj, axis=1, keepdims=True), 1.0, None)
    a = adj / deg
    w1n, w1s, b1, w2n, w2s, b2 = params
    h = jnp.maximum((a @ x) @ w1n + x @ w1s + b1, 0.0)
    z = (a @ h) @ w2n + h @ w2s + b2
    return jax.nn.log_softmax(z, axis=-1)


# --------------------------------------------------------------------------- #
# Demo
# --------------------------------------------------------------------------- #
if __name__ == "__main__":
    key = jax.random.PRNGKey(0)
    k_x, k_e, k_p = jax.random.split(key, 3)

    N, IN_C, HID_C, OUT_C, E = 16, 8, 32, 8, 48

    x = jax.random.normal(k_x, (N, IN_C), dtype=jnp.float32)
    edge_index = jax.random.randint(k_e, (2, E), 0, N, dtype=jnp.int32)
    params = init_params(k_p, IN_C, HID_C, OUT_C)

    out = sage_forward(x, edge_index, params)
    out = jax.block_until_ready(out)

    assert out.shape == (N, OUT_C)
    # log_softmax rows should sum (in prob space) to ~1
    assert bool(jnp.allclose(jnp.sum(jnp.exp(out), axis=-1), 1.0, atol=1e-4))
    # parity with a pure-JAX f32 reference (loose tol: A / x / yn go bf16 on the MXU)
    ref = sage_reference(x, edge_index, params)
    assert bool(jnp.allclose(out, ref, atol=1e-1, rtol=1e-2))
    print("KERNEL_OK")
</pallas_src>

<mosaic_0001>
module attributes {stable_mosaic.version = 11 : i64} {
  func.func @_sage_layer1_kernel(%arg0: i32, %arg1: i32, %arg2: memref<256x256xbf16, #tpu.memory_space<vmem>>, %arg3: memref<256x128xbf16, #tpu.memory_space<vmem>>, %arg4: memref<256x128xf32, #tpu.memory_space<vmem>>, %arg5: memref<1x128xf32, #tpu.memory_space<vmem>>, %arg6: memref<128x128xf32, #tpu.memory_space<vmem>>, %arg7: memref<256x128xf32, #tpu.memory_space<vmem>>, %arg8: memref<256x128xbf16, #tpu.memory_space<vmem>>, %arg9: memref<256x1xf32, #tpu.memory_space<vmem>>, %arg10: memref<256x128xf32, #tpu.memory_space<vmem>>, %arg11: memref<256x1xf32, #tpu.memory_space<vmem>>) attributes {dimension_semantics = [#tpu.dimension_semantics<parallel>, #tpu.dimension_semantics<arbitrary>], iteration_bounds = array<i64: 1, 1>, scalar_prefetch = 0 : i64, scratch_operands = 2 : i64, tpu.core_type = #tpu.core_type<tc>, window_params = [{transform_indices = @transform_0, window_bounds = array<i64: 256, 256>}, {pipeline_mode = #tpu.pipeline_mode<synchronous>, transform_indices = @transform_1, window_bounds = array<i64: 256, 128>}, {pipeline_mode = #tpu.pipeline_mode<synchronous>, transform_indices = @transform_2, window_bounds = array<i64: 256, 128>}, {pipeline_mode = #tpu.pipeline_mode<synchronous>, transform_indices = @transform_3, window_bounds = array<i64: 1, 128>}, {pipeline_mode = #tpu.pipeline_mode<synchronous>, transform_indices = @transform_4, window_bounds = array<i64: 128, 128>}, {transform_indices = @transform_5, window_bounds = array<i64: 256, 128>}, {transform_indices = @transform_6, window_bounds = array<i64: 256, 128>}, {transform_indices = @transform_7, window_bounds = array<i64: 256, 1>}]} {
    %c0_i32 = arith.constant 0 : i32
    %0 = arith.cmpi eq, %arg1, %c0_i32 : i32
    %1 = arith.extui %0 : i1 to i32
    %c0_i32_0 = arith.constant 0 : i32
    %2 = arith.cmpi ne, %1, %c0_i32_0 : i32
    scf.if %2 {
      %cst_14 = arith.constant 0.000000e+00 : f32
      %21 = vector.broadcast %cst_14 : f32 to vector<256x128xf32>
      %c0_15 = arith.constant 0 : index
      %c0_16 = arith.constant 0 : index
      %22 = vector.load %arg10[%c0_15, %c0_16] : memref<256x128xf32, #tpu.memory_space<vmem>>, vector<256x128xf32>
      tpu.vector_store %arg10[%c0_15, %c0_16], %21 {strides = array<i32>} : memref<256x128xf32, #tpu.memory_space<vmem>>, vector<256x128xf32>,
      %cst_17 = arith.constant 0.000000e+00 : f32
      %23 = vector.broadcast %cst_17 : f32 to vector<256x1xf32>
      %c0_18 = arith.constant 0 : index
      %c0_19 = arith.constant 0 : index
      %24 = vector.load %arg11[%c0_18, %c0_19] : memref<256x1xf32, #tpu.memory_space<vmem>>, vector<256x1xf32>
      tpu.vector_store %arg11[%c0_18, %c0_19], %23 {strides = array<i32>} : memref<256x1xf32, #tpu.memory_space<vmem>>, vector<256x1xf32>,
    } else {
    }
    %c0 = arith.constant 0 : index
    %c0_1 = arith.constant 0 : index
    %3 = vector.load %arg2[%c0, %c0_1] : memref<256x256xbf16, #tpu.memory_space<vmem>>, vector<256x256xbf16>
    %c256_i32 = arith.constant 256 : i32
    %4 = arith.muli %arg1, %c256_i32 : i32
    %5 = tpu.assume_multiple %4, 256 : i32
    %6 = arith.index_cast %5 : i32 to index
    %c0_2 = arith.constant 0 : index
    %7 = vector.load %arg3[%6, %c0_2] : memref<256x128xbf16, #tpu.memory_space<vmem>>, vector<256x128xbf16>
    %c0_3 = arith.constant 0 : index
    %c0_4 = arith.constant 0 : index
    %8 = vector.load %arg10[%c0_3, %c0_4] : memref<256x128xf32, #tpu.memory_space<vmem>>, vector<256x128xf32>
    %cst = arith.constant dense<0.000000e+00> : vector<256x128xf32>
    %9 = tpu.matmul %3, %7, %cst {dimension_numbers = #tpu.dot_dimension_numbers<[1], [0], [0], [1], [0, 0, 1, 1], [], []>} : vector<256x256xbf16>, vector<256x128xbf16>, vector<256x128xf32> -> vector<256x128xf32>
    %10 = arith.addf %8, %9 : vector<256x128xf32>
    %c0_5 = arith.constant 0 : index
    %c0_6 = arith.constant 0 : index
    %11 = vector.load %arg10[%c0_5, %c0_6] : memref<256x128xf32, #tpu.memory_space<vmem>>, vector<256x128xf32>
    tpu.vector_store %arg10[%c0_5, %c0_6], %10 {strides = array<i32>} : memref<256x128xf32, #tpu.memory_space<vmem>>, vector<256x128xf32>,
    %c0_7 = arith.constant 0 : index
    %c0_8 = arith.constant 0 : index
    %12 = vector.load %arg11[%c0_7, %c0_8] : memref<256x1xf32, #tpu.memory_space<vmem>>, vector<256x1xf32>
    %13 = arith.extf %3 : vector<256x256xbf16> to vector<256x256xf32>
    %cst_9 = arith.constant dense<0.000000e+00> : vector<256xf32>
    %14 = vector.multi_reduction <add>, %13, %cst_9 [1] : vector<256x256xf32> to vector<256xf32>
    %15 = vector.shape_cast %14 : vector<256xf32> to vector<256x1xf32>
    %16 = arith.addf %12, %15 : vector<256x1xf32>
    %c0_10 = arith.constant 0 : index
    %c0_11 = arith.constant 0 : index
    %17 = vector.load %arg11[%c0_10, %c0_11] : memref<256x1xf32, #tpu.memory_space<vmem>>, vector<256x1xf32>
    tpu.vector_store %arg11[%c0_10, %c0_11], %16 {strides = array<i32>} : memref<256x1xf32, #tpu.memory_space<vmem>>, vector<256x1xf32>,
    %c0_i32_12 = arith.constant 0 : i32
    %18 = arith.cmpi eq, %arg1, %c0_i32_12 : i32
    %19 = arith.extui %18 : i1 to i32
    %c0_i32_13 = arith.constant 0 : i32
    %20 = arith.cmpi ne, %19, %c0_i32_13 : i32
    scf.if %20 {
      %c0_14 = arith.constant 0 : index
      %c0_15 = arith.constant 0 : index
      %21 = vector.load %arg11[%c0_14, %c0_15] : memref<256x1xf32, #tpu.memory_space<vmem>>, vector<256x1xf32>
      %cst_16 = arith.constant 1.000000e+00 : f32
      %22 = vector.broadcast %cst_16 : f32 to vector<256x1xf32>
      %23 = arith.maximumf %21, %22 : vector<256x1xf32>
      %cst_17 = arith.constant 1.000000e+00 : f32
      %24 = vector.broadcast %cst_17 : f32 to vector<256x1xf32>
      %25 = arith.divf %24, %23 : vector<256x1xf32>
      %c0_18 = arith.constant 0 : index
      %c0_19 = arith.constant 0 : index
      %26 = vector.load %arg9[%c0_18, %c0_19] : memref<256x1xf32, #tpu.memory_space<vmem>>, vector<256x1xf32>
      tpu.vector_store %arg9[%c0_18, %c0_19], %25 {strides = array<i32>} : memref<256x1xf32, #tpu.memory_space<vmem>>, vector<256x1xf32>,
      %c0_20 = arith.constant 0 : index
      %c0_21 = arith.constant 0 : index
      %27 = vector.load %arg10[%c0_20, %c0_21] : memref<256x128xf32, #tpu.memory_space<vmem>>, vector<256x128xf32>
      %28 = vector.broadcast %25 : vector<256x1xf32> to vector<256x128xf32>
      %29 = arith.mulf %27, %28 : vector<256x128xf32>
      %c256_i32_22 = arith.constant 256 : i32
      %30 = arith.muli %arg0, %c256_i32_22 : i32
      %31 = tpu.assume_multiple %30, 256 : i32
      %32 = arith.index_cast %31 : i32 to index
      %c0_23 = arith.constant 0 : index
      %33 = vector.load %arg3[%32, %c0_23] : memref<256x128xbf16, #tpu.memory_space<vmem>>, vector<256x128xbf16>
      %34 = arith.extf %33 : vector<256x128xbf16> to vector<256x128xf32>
      %35 = tpu.concatenate %29, %34 in 1 : vector<256x128xf32>, vector<256x128xf32> -> vector<256x256xf32>
      %c0_24 = arith.constant 0 : index
      %c0_25 = arith.constant 0 : index
      %36 = vector.load %arg4[%c0_24, %c0_25] : memref<256x128xf32, #tpu.memory_space<vmem>>, vector<256x128xf32>
      %cst_26 = arith.constant dense<0.000000e+00> : vector<256x128xf32>
      %37 = tpu.matmul %35, %36, %cst_26 {dimension_numbers = #tpu.dot_dimension_numbers<[1], [0], [0], [1], [0, 0, 1, 1], [], []>} : vector<256x256xf32>, vector<256x128xf32>, vector<256x128xf32> -> vector<256x128xf32>
      %c0_27 = arith.constant 0 : index
      %c0_28 = arith.constant 0 : index
      %38 = vector.load %arg5[%c0_27, %c0_28] : memref<1x128xf32, #tpu.memory_space<vmem>>, vector<1x128xf32>
      %39 = vector.broadcast %38 : vector<1x128xf32> to vector<256x128xf32>
      %40 = arith.addf %37, %39 : vector<256x128xf32>
      %cst_29 = arith.constant 0.000000e+00 : f32
      %41 = vector.broadcast %cst_29 : f32 to vector<256x128xf32>
      %42 = arith.maximumf %40, %41 : vector<256x128xf32>
      %c0_30 = arith.constant 0 : index
      %c0_31 = arith.constant 0 : index
      %43 = vector.load %arg7[%c0_30, %c0_31] : memref<256x128xf32, #tpu.memory_space<vmem>>, vector<256x128xf32>
      tpu.vector_store %arg7[%c0_30, %c0_31], %42 {strides = array<i32>} : memref<256x128xf32, #tpu.memory_space<vmem>>, vector<256x128xf32>,
      %c0_32 = arith.constant 0 : index
      %c0_33 = arith.constant 0 : index
      %44 = vector.load %arg6[%c0_32, %c0_33] : memref<128x128xf32, #tpu.memory_space<vmem>>, vector<128x128xf32>
      %cst_34 = arith.constant dense<0.000000e+00> : vector<256x128xf32>
      %45 = tpu.matmul %42, %44, %cst_34 {dimension_numbers = #tpu.dot_dimension_numbers<[1], [0], [0], [1], [0, 0, 1, 1], [], []>} : vector<256x128xf32>, vector<128x128xf32>, vector<256x128xf32> -> vector<256x128xf32>
      %46 = arith.truncf %45 : vector<256x128xf32> to vector<256x128xbf16>
      %c0_35 = arith.constant 0 : index
      %c0_36 = arith.constant 0 : index
      %47 = vector.load %arg8[%c0_35, %c0_36] : memref<256x128xbf16, #tpu.memory_space<vmem>>, vector<256x128xbf16>
      tpu.vector_store %arg8[%c0_35, %c0_36], %46 {strides = array<i32>} : memref<256x128xbf16, #tpu.memory_space<vmem>>, vector<256x128xbf16>,
    } else {
    }
    return
  }
  func.func @transform_0(%arg0: i32, %arg1: i32) -> (i32, i32) {
    %c0_i32 = arith.constant 0 : i32
    return %arg0, %arg1 : i32, i32
  }
  func.func @transform_1(%arg0: i32, %arg1: i32) -> (i32, i32) {
    %c0_i32 = arith.constant 0 : i32
    %c0_i32_0 = arith.constant 0 : i32
    %c0_i32_1 = arith.constant 0 : i32
    return %c0_i32, %c0_i32_0 : i32, i32
  }
  func.func @transform_2(%arg0: i32, %arg1: i32) -> (i32, i32) {
    %c0_i32 = arith.constant 0 : i32
    %c0_i32_0 = arith.constant 0 : i32
    %c0_i32_1 = arith.constant 0 : i32
    return %c0_i32, %c0_i32_0 : i32, i32
  }
  func.func @transform_3(%arg0: i32, %arg1: i32) -> (i32, i32) {
    %c0_i32 = arith.constant 0 : i32
    %c0_i32_0 = arith.constant 0 : i32
    %c0_i32_1 = arith.constant 0 : i32
    return %c0_i32, %c0_i32_0 : i32, i32
  }
  func.func @transform_4(%arg0: i32, %arg1: i32) -> (i32, i32) {
    %c0_i32 = arith.constant 0 : i32
    %c0_i32_0 = arith.constant 0 : i32
    %c0_i32_1 = arith.constant 0 : i32
    return %c0_i32, %c0_i32_0 : i32, i32
  }
  func.func @transform_5(%arg0: i32, %arg1: i32) -> (i32, i32) {
    %c0_i32 = arith.constant 0 : i32
    %c0_i32_0 = arith.constant 0 : i32
    return %arg0, %c0_i32 : i32, i32
  }
  func.func @transform_6(%arg0: i32, %arg1: i32) -> (i32, i32) {
    %c0_i32 = arith.constant 0 : i32
    %c0_i32_0 = arith.constant 0 : i32
    return %arg0, %c0_i32 : i32, i32
  }
  func.func @transform_7(%arg0: i32, %arg1: i32) -> (i32, i32) {
    %c0_i32 = arith.constant 0 : i32
    %c0_i32_0 = arith.constant 0 : i32
    return %arg0, %c0_i32 : i32, i32
  }
}

</mosaic_0001>

<llo_original>
// kernel: tpu_custom_call.1
$region0: #{tpu_custom_call.1}
  #allocation0 [shape = 'u32[]', space=smem, size = 0x4, offset = 0x4, fixed_abs, tag = 'smem constant byte address 0x4 - core index']
  #allocation1 [shape = 'u32[144,128]{1,0:T(1,128)}', space=vmem, size = 0x12000, scoped, tag = 'internal scratch']
  #allocation2 [shape = 'f32[256,128]{1,0:T(8,128)}', space=vmem, size = 0x20000, scoped, tag = 'scratch operand']
  #allocation3 [shape = 'f32[256,1]{1,0:T(8,128)}', space=vmem, size = 0x20000, scoped, tag = 'scratch operand']
  %s0 = inlined_call_operand.hbm [shape: bf16[256,256], index: 0, kind: input, shape index: {}]
  %s1 = inlined_call_operand.hbm [shape: bf16[256,128], index: 1, kind: input, shape index: {}]
  %s2 = inlined_call_operand.hbm [shape: f32[256,128], index: 2, kind: input, shape index: {}]
  %s3 = inlined_call_operand.vmem [shape: f32[1,128], index: 3, kind: input, shape index: {}]
  %s4 = inlined_call_operand.hbm [shape: f32[128,128], index: 4, kind: input, shape index: {}]
  %s5 = inlined_call_operand.hbm [shape: f32[256,128], index: 5, kind: output, shape index: {0}]
  %s6 = inlined_call_operand.hbm [shape: bf16[256,128], index: 6, kind: output, shape index: {1}]
  %s7 = inlined_call_operand.vmem [shape: f32[256,1], index: 7, kind: output, shape index: {2}]
  %8 = xla_tuple %s5, %s6, %s7
  %s9 = sld [smem:[#allocation0]]
  $region70: #{tpu_custom_call.1} parent=0
    _
  %s11 = ssub.s32 1, %s9
  %s12 = scalar_select 0, %s11, %s9
  $region1: #{tpu_custom_call.1} parent=0
    #allocation4 [shape = 'u8[131072]{0}', space=vmem, size = 0x20000, scoped, tag = 'input window, operand 0, single buffered']
    #allocation5 [shape = 's32[1]{0}', space=sflag, size = 0x4, scoped, tag = 'scoped memory for tpu_custom_call.1']
    #allocation6 [shape = 's32[1]{0}', space=sflag, size = 0x4, scoped, tag = 'scoped memory for tpu_custom_call.1']
    #allocation7 [shape = 'u8[65536]{0}', space=vmem, size = 0x10000, scoped, tag = 'input window, operand 1, single buffered']
    #allocation8 [shape = 's32[1]{0}', space=sflag, size = 0x4, scoped, tag = 'scoped memory for tpu_custom_call.1']
    #allocation9 [shape = 'u8[131072]{0}', space=vmem, size = 0x20000, scoped, tag = 'input window, operand 2, single buffered']
    #allocation10 [shape = 'u8[65536]{0}', space=vmem, size = 0x10000, scoped, tag = 'input window, operand 4, single buffered']
    #allocation11 [shape = 's32[1]{0}', space=sflag, size = 0x4, scoped, tag = 'scoped memory for tpu_custom_call.1']
    #allocation12 [shape = 'u8[131072]{0}', space=vmem, size = 0x20000, scoped, tag = 'output window, operand 0, single buffered']
    #allocation13 [shape = 'u8[65536]{0}', space=vmem, size = 0x10000, scoped, tag = 'output window, operand 1, single buffered']
    #allocation14 [shape = 's32[1]{0}', space=sflag, size = 0x4, scoped, tag = 'scoped memory for tpu_custom_call.1']
    %13 = vsyncpa [#allocation5], 0
    %14 = vsyncpa [#allocation8], 0
    %15 = vsyncpa [#allocation11], 0
    %16 = vsyncpa [#allocation6], 0
    %17 = vsyncpa [#allocation14], 0
    // Predicated region
    $region2: #{tpu_custom_call.1} parent=1 // pred_check
      _
    $region3: #{tpu_custom_call.1} parent=1 // pred_check_branch
      %19 = sbr.rel (0) target = $region5
    $region4: #{tpu_custom_call.1} parent=1 // pred_region
      %s21 = ssub.s32 4096, 4096
      %22 = vsyncadd [#allocation5], %s21
      %s23 = sshll.u32 [#allocation4], 4
      %s24 = int_to_ptr.vmem [resolvable:$true] %s23
      %29 = dma.hbm_to_vmem [thread:$0]  %s0, 4096, %s24, [#allocation5], 128, 128, 8
    $region5: #{tpu_custom_call.1} parent=1 // pred_fallthru
      _
    // Predicated region
    $region6: #{tpu_custom_call.1} parent=1 // pred_check
      _
    $region7: #{tpu_custom_call.1} parent=1 // pred_check_branch
      %31 = sbr.rel (0) target = $region9
    $region8: #{tpu_custom_call.1} parent=1 // pred_region
      %s33 = ssub.s32 2048, 2048
      %34 = vsyncadd [#allocation8], %s33
      %s35 = sshll.u32 [#allocation7], 4
      %s36 = int_to_ptr.vmem [resolvable:$true] %s35
      %41 = dma.hbm_to_vmem [thread:$0]  %s1, 2048, %s36, [#allocation8], 64, 64, 4
    $region9: #{tpu_custom_call.1} parent=1 // pred_fallthru
      _
    // Predicated region
    $region10: #{tpu_custom_call.1} parent=1 // pred_check
      _
    $region11: #{tpu_custom_call.1} parent=1 // pred_check_branch
      %43 = sbr.rel (0) target = $region13
    $region12: #{tpu_custom_call.1} parent=1 // pred_region
      %s45 = ssub.s32 4096, 4096
      %46 = vsyncadd [#allocation8], %s45
      %s47 = sshll.u32 [#allocation9], 4
      %s48 = int_to_ptr.vmem [resolvable:$true] %s47
      %53 = dma.hbm_to_vmem [thread:$0]  %s2, 4096, %s48, [#allocation8], 128, 128, 8
    $region13: #{tpu_custom_call.1} parent=1 // pred_fallthru
      _
    // Predicated region
    $region14: #{tpu_custom_call.1} parent=1 // pred_check
      _
    $region15: #{tpu_custom_call.1} parent=1 // pred_check_branch
      %55 = sbr.rel (0) target = $region17
    $region16: #{tpu_custom_call.1} parent=1 // pred_region
      _
    $region17: #{tpu_custom_call.1} parent=1 // pred_fallthru
      _
    // Predicated region
    $region18: #{tpu_custom_call.1} parent=1 // pred_check
      _
    $region19: #{tpu_custom_call.1} parent=1 // pred_check_branch
      %57 = sbr.rel (0) target = $region21
    $region20: #{tpu_custom_call.1} parent=1 // pred_region
      %s59 = ssub.s32 2048, 2048
      %60 = vsyncadd [#allocation11], %s59
      %s61 = sshll.u32 [#allocation10], 4
      %s62 = int_to_ptr.vmem [resolvable:$true] %s61
      %67 = dma.hbm_to_vmem [thread:$0]  %s4, 2048, %s62, [#allocation11], 128, 128, 8
    $region21: #{tpu_custom_call.1} parent=1 // pred_fallthru
      _
    // Predicated region
    $region22: #{tpu_custom_call.1} parent=1 // pred_check
      _
    $region23: #{tpu_custom_call.1} parent=1 // pred_check_branch
      %69 = sbr.rel (0) target = $region25
    $region24: #{tpu_custom_call.1} parent=1 // pred_region
      %70 = dma.done [#allocation5], 4096
    $region25: #{tpu_custom_call.1} parent=1 // pred_fallthru
      _
    // Predicated region
    $region26: #{tpu_custom_call.1} parent=1 // pred_check
      _
    $region27: #{tpu_custom_call.1} parent=1 // pred_check_branch
      %72 = sbr.rel (0) target = $region29
    $region28: #{tpu_custom_call.1} parent=1 // pred_region
      %73 = dma.done [#allocation8], 2048
    $region29: #{tpu_custom_call.1} parent=1 // pred_fallthru
      _
    // Predicated region
    $region30: #{tpu_custom_call.1} parent=1 // pred_check
      _
    $region31: #{tpu_custom_call.1} parent=1 // pred_check_branch
      %75 = sbr.rel (0) target = $region33
    $region32: #{tpu_custom_call.1} parent=1 // pred_region
      %76 = dma.done [#allocation8], 4096
    $region33: #{tpu_custom_call.1} parent=1 // pred_fallthru
      _
    // Predicated region
    $region34: #{tpu_custom_call.1} parent=1 // pred_check
      _
    $region35: #{tpu_custom_call.1} parent=1 // pred_check_branch
      %78 = sbr.rel (0) target = $region37
    $region36: #{tpu_custom_call.1} parent=1 // pred_region
      %79 = dma.done [#allocation11], 2048
    $region37: #{tpu_custom_call.1} parent=1 // pred_fallthru
      _
    %p81 = scmp.eq.s32.totalorder 0, 0
    // Predicated region
    $region38: #{tpu_custom_call.1} parent=1 // pred_check
      %p82 = pneg %p81
    $region39: #{tpu_custom_call.1} parent=1 // pred_check_branch
      %84 = sbr.rel (%p82) target = $region41
    $region40: #{tpu_custom_call.1} parent=1 // pred_region
      %85 = vst [vmem:[#allocation2] sm:$0xff] 0.0
      %86 = vst [vmem:[#allocation2 + $0x8] sm:$0xff] 0.0
      %87 = vst [vmem:[#allocation2 + $0x10] sm:$0xff] 0.0
      %88 = vst [vmem:[#allocation2 + $0x18] sm:$0xff] 0.0
      %89 = vst [vmem:[#allocation2 + $0x20] sm:$0xff] 0.0
      %90 = vst [vmem:[#allocation2 + $0x28] sm:$0xff] 0.0
      %91 = vst [vmem:[#allocation2 + $0x30] sm:$0xff] 0.0
      %92 = vst [vmem:[#allocation2 + $0x38] sm:$0xff] 0.0
      %93 = vst [vmem:[#allocation2 + $0x40] sm:$0xff] 0.0
      %94 = vst [vmem:[#allocation2 + $0x48] sm:$0xff] 0.0
      %95 = vst [vmem:[#allocation2 + $0x50] sm:$0xff] 0.0
      %96 = vst [vmem:[#allocation2 + $0x58] sm:$0xff] 0.0
      %97 = vst [vmem:[#allocation2 + $0x60] sm:$0xff] 0.0
      %98 = vst [vmem:[#allocation2 + $0x68] sm:$0xff] 0.0
      %99 = vst [vmem:[#allocation2 + $0x70] sm:$0xff] 0.0
      %100 = vst [vmem:[#allocation2 + $0x78] sm:$0xff] 0.0
      %101 = vst [vmem:[#allocation2 + $0x80] sm:$0xff] 0.0
      %102 = vst [vmem:[#allocation2 + $0x88] sm:$0xff] 0.0
      %103 = vst [vmem:[#allocation2 + $0x90] sm:$0xff] 0.0
      %104 = vst [vmem:[#allocation2 + $0x98] sm:$0xff] 0.0
      %105 = vst [vmem:[#allocation2 + $0xa0] sm:$0xff] 0.0
      %106 = vst [vmem:[#allocation2 + $0xa8] sm:$0xff] 0.0
      %107 = vst [vmem:[#allocation2 + $0xb0] sm:$0xff] 0.0
      %108 = vst [vmem:[#allocation2 + $0xb8] sm:$0xff] 0.0
      %109 = vst [vmem:[#allocation2 + $0xc0] sm:$0xff] 0.0
      %110 = vst [vmem:[#allocation2 + $0xc8] sm:$0xff] 0.0
      %111 = vst [vmem:[#allocation2 + $0xd0] sm:$0xff] 0.0
      %112 = vst [vmem:[#allocation2 + $0xd8] sm:$0xff] 0.0
      %113 = vst [vmem:[#allocation2 + $0xe0] sm:$0xff] 0.0
      %114 = vst [vmem:[#allocation2 + $0xe8] sm:$0xff] 0.0
      %115 = vst [vmem:[#allocation2 + $0xf0] sm:$0xff] 0.0
      %116 = vst [vmem:[#allocation2 + $0xf8] sm:$0xff] 0.0
      %vm117 = vcmask 7168
      %118 = vst.msk [vmem:[#allocation3] sm:$0xff] %vm117, 0.0
      %119 = vst.msk [vmem:[#allocation3 + $0x8] sm:$0xff] %vm117, 0.0
      %120 = vst.msk [vmem:[#allocation3 + $0x10] sm:$0xff] %vm117, 0.0
      %121 = vst.msk [vmem:[#allocation3 + $0x18] sm:$0xff] %vm117, 0.0
      %122 = vst.msk [vmem:[#allocation3 + $0x20] sm:$0xff] %vm117, 0.0
      %123 = vst.msk [vmem:[#allocation3 + $0x28] sm:$0xff] %vm117, 0.0
      %124 = vst.msk [vmem:[#allocation3 + $0x30] sm:$0xff] %vm117, 0.0
      %125 = vst.msk [vmem:[#allocation3 + $0x38] sm:$0xff] %vm117, 0.0
      %126 = vst.msk [vmem:[#allocation3 + $0x40] sm:$0xff] %vm117, 0.0
      %127 = vst.msk [vmem:[#allocation3 + $0x48] sm:$0xff] %vm117, 0.0
      %128 = vst.msk [vmem:[#allocation3 + $0x50] sm:$0xff] %vm117, 0.0
      %129 = vst.msk [vmem:[#allocation3 + $0x58] sm:$0xff] %vm117, 0.0
      %130 = vst.msk [vmem:[#allocation3 + $0x60] sm:$0xff] %vm117, 0.0
      %131 = vst.msk [vmem:[#allocation3 + $0x68] sm:$0xff] %vm117, 0.0
      %132 = vst.msk [vmem:[#allocation3 + $0x70] sm:$0xff] %vm117, 0.0
      %133 = vst.msk [vmem:[#allocation3 + $0x78] sm:$0xff] %vm117, 0.0
      %134 = vst.msk [vmem:[#allocation3 + $0x80] sm:$0xff] %vm117, 0.0
      %135 = vst.msk [vmem:[#allocation3 + $0x88] sm:$0xff] %vm117, 0.0
      %136 = vst.msk [vmem:[#allocation3 + $0x90] sm:$0xff] %vm117, 0.0
      %137 = vst.msk [vmem:[#allocation3 + $0x98] sm:$0xff] %vm117, 0.0
      %138 = vst.msk [vmem:[#allocation3 + $0xa0] sm:$0xff] %vm117, 0.0
      %139 = vst.msk [vmem:[#allocation3 + $0xa8] sm:$0xff] %vm117, 0.0
      %140 = vst.msk [vmem:[#allocation3 + $0xb0] sm:$0xff] %vm117, 0.0
      %141 = vst.msk [vmem:[#allocation3 + $0xb8] sm:$0xff] %vm117, 0.0
      %142 = vst.msk [vmem:[#allocation3 + $0xc0] sm:$0xff] %vm117, 0.0
      %143 = vst.msk [vmem:[#allocation3 + $0xc8] sm:$0xff] %vm117, 0.0
      %144 = vst.msk [vmem:[#allocation3 + $0xd0] sm:$0xff] %vm117, 0.0
      %145 = vst.msk [vmem:[#allocation3 + $0xd8] sm:$0xff] %vm117, 0.0
      %146 = vst.msk [vmem:[#allocation3 + $0xe0] sm:$0xff] %vm117, 0.0
      %147 = vst.msk [vmem:[#allocation3 + $0xe8] sm:$0xff] %vm117, 0.0
      %148 = vst.msk [vmem:[#allocation3 + $0xf0] sm:$0xff] %vm117, 0.0
      %149 = vst.msk [vmem:[#allocation3 + $0xf8] sm:$0xff] %vm117, 0.0
    $region41: #{tpu_custom_call.1} parent=1 // pred_fallthru
      _
    %v150 = vld [vmem:[#allocation4] sm:$0xff]
    %v151 = vld [vmem:[#allocation4 + $0x8] sm:$0xff]
    %v152 = vld [vmem:[#allocation4 + $0x10] sm:$0xff]
    %v153 = vld [vmem:[#allocation4 + $0x18] sm:$0xff]
    %v154 = vld [vmem:[#allocation4 + $0x20] sm:$0xff]
    %v155 = vld [vmem:[#allocation4 + $0x28] sm:$0xff]
    %v156 = vld [vmem:[#allocation4 + $0x30] sm:$0xff]
    %v157 = vld [vmem:[#allocation4 + $0x38] sm:$0xff]
    %v158 = vld [vmem:[#allocation4 + $0x40] sm:$0xff]
    %v159 = vld [vmem:[#allocation4 + $0x48] sm:$0xff]
    %v160 = vld [vmem:[#allocation4 + $0x50] sm:$0xff]
    %v161 = vld [vmem:[#allocation4 + $0x58] sm:$0xff]
    %v162 = vld [vmem:[#allocation4 + $0x60] sm:$0xff]
    %v163 = vld [vmem:[#allocation4 + $0x68] sm:$0xff]
    %v164 = vld [vmem:[#allocation4 + $0x70] sm:$0xff]
    %v165 = vld [vmem:[#allocation4 + $0x78] sm:$0xff]
    %v166 = vld [vmem:[#allocation4 + $0x80] sm:$0xff]
    %v167 = vld [vmem:[#allocation4 + $0x88] sm:$0xff]
    %v168 = vld [vmem:[#allocation4 + $0x90] sm:$0xff]
    %v169 = vld [vmem:[#allocation4 + $0x98] sm:$0xff]
    %v170 = vld [vmem:[#allocation4 + $0xa0] sm:$0xff]
    %v171 = vld [vmem:[#allocation4 + $0xa8] sm:$0xff]
    %v172 = vld [vmem:[#allocation4 + $0xb0] sm:$0xff]
    %v173 = vld [vmem:[#allocation4 + $0xb8] sm:$0xff]
    %v174 = vld [vmem:[#allocation4 + $0xc0] sm:$0xff]
    %v175 = vld [vmem:[#allocation4 + $0xc8] sm:$0xff]
    %v176 = vld [vmem:[#allocation4 + $0xd0] sm:$0xff]
    %v177 = vld [vmem:[#allocation4 + $0xd8] sm:$0xff]
    %v178 = vld [vmem:[#allocation4 + $0xe0] sm:$0xff]
    %v179 = vld [vmem:[#allocation4 + $0xe8] sm:$0xff]
    %v180 = vld [vmem:[#allocation4 + $0xf0] sm:$0xff]
    %v181 = vld [vmem:[#allocation4 + $0xf8] sm:$0xff]
    %s182 = smul.u32 0, 256
    %s183 = sshra.s32 %s182, 3
    %s184 = sand.u32 %s182, 7
    %s185 = smul.addr %s183, 4
    %s186 = scalar_lea.vmem [#allocation7], %s185
    %v187 = vld [vmem:[%s186] sm:$0xf]
    %v188 = vld [vmem:[%s186 + $0x4] sm:$0xf]
    %v189 = vld [vmem:[%s186 + $0x8] sm:$0xf]
    %v190 = vld [vmem:[%s186 + $0xc] sm:$0xf]
    %v191 = vld [vmem:[%s186 + $0x10] sm:$0xf]
    %v192 = vld [vmem:[%s186 + $0x14] sm:$0xf]
    %v193 = vld [vmem:[%s186 + $0x18] sm:$0xf]
    %v194 = vld [vmem:[%s186 + $0x1c] sm:$0xf]
    %v195 = vld [vmem:[%s186 + $0x20] sm:$0xf]
    %v196 = vld [vmem:[%s186 + $0x24] sm:$0xf]
    %v197 = vld [vmem:[%s186 + $0x28] sm:$0xf]
    %v198 = vld [vmem:[%s186 + $0x2c] sm:$0xf]
    %v199 = vld [vmem:[%s186 + $0x30] sm:$0xf]
    %v200 = vld [vmem:[%s186 + $0x34] sm:$0xf]
    %v201 = vld [vmem:[%s186 + $0x38] sm:$0xf]
    %v202 = vld [vmem:[%s186 + $0x3c] sm:$0xf]
    %v203 = vld [vmem:[%s186 + $0x40] sm:$0xf]
    %v204 = vld [vmem:[%s186 + $0x44] sm:$0xf]
    %v205 = vld [vmem:[%s186 + $0x48] sm:$0xf]
    %v206 = vld [vmem:[%s186 + $0x4c] sm:$0xf]
    %v207 = vld [vmem:[%s186 + $0x50] sm:$0xf]
    %v208 = vld [vmem:[%s186 + $0x54] sm:$0xf]
    %v209 = vld [vmem:[%s186 + $0x58] sm:$0xf]
    %v210 = vld [vmem:[%s186 + $0x5c] sm:$0xf]
    %v211 = vld [vmem:[%s186 + $0x60] sm:$0xf]
    %v212 = vld [vmem:[%s186 + $0x64] sm:$0xf]
    %v213 = vld [vmem:[%s186 + $0x68] sm:$0xf]
    %v214 = vld [vmem:[%s186 + $0x6c] sm:$0xf]
    %v215 = vld [vmem:[%s186 + $0x70] sm:$0xf]
    %v216 = vld [vmem:[%s186 + $0x74] sm:$0xf]
    %v217 = vld [vmem:[%s186 + $0x78] sm:$0xf]
    %v218 = vld [vmem:[%s186 + $0x7c] sm:$0xf]
    %v219 = vld [vmem:[#allocation2] sm:$0xff]
    %v220 = vld [vmem:[#allocation2 + $0x8] sm:$0xff]
    %v221 = vld [vmem:[#allocation2 + $0x10] sm:$0xff]
    %v222 = vld [vmem:[#allocation2 + $0x18] sm:$0xff]
    %v223 = vld [vmem:[#allocation2 + $0x20] sm:$0xff]
    %v224 = vld [vmem:[#allocation2 + $0x28] sm:$0xff]
    %v225 = vld [vmem:[#allocation2 + $0x30] sm:$0xff]
    %v226 = vld [vmem:[#allocation2 + $0x38] sm:$0xff]
    %v227 = vld [vmem:[#allocation2 + $0x40] sm:$0xff]
    %v228 = vld [vmem:[#allocation2 + $0x48] sm:$0xff]
    %v229 = vld [vmem:[#allocation2 + $0x50] sm:$0xff]
    %v230 = vld [vmem:[#allocation2 + $0x58] sm:$0xff]
    %v231 = vld [vmem:[#allocation2 + $0x60] sm:$0xff]
    %v232 = vld [vmem:[#allocation2 + $0x68] sm:$0xff]
    %v233 = vld [vmem:[#allocation2 + $0x70] sm:$0xff]
    %v234 = vld [vmem:[#allocation2 + $0x78] sm:$0xff]
    %v235 = vld [vmem:[#allocation2 + $0x80] sm:$0xff]
    %v236 = vld [vmem:[#allocation2 + $0x88] sm:$0xff]
    %v237 = vld [vmem:[#allocation2 + $0x90] sm:$0xff]
    %v238 = vld [vmem:[#allocation2 + $0x98] sm:$0xff]
    %v239 = vld [vmem:[#allocation2 + $0xa0] sm:$0xff]
    %v240 = vld [vmem:[#allocation2 + $0xa8] sm:$0xff]
    %v241 = vld [vmem:[#allocation2 + $0xb0] sm:$0xff]
    %v242 = vld [vmem:[#allocation2 + $0xb8] sm:$0xff]
    %v243 = vld [vmem:[#allocation2 + $0xc0] sm:$0xff]
    %v244 = vld [vmem:[#allocation2 + $0xc8] sm:$0xff]
    %v245 = vld [vmem:[#allocation2 + $0xd0] sm:$0xff]
    %v246 = vld [vmem:[#allocation2 + $0xd8] sm:$0xff]
    %v247 = vld [vmem:[#allocation2 + $0xe0] sm:$0xff]
    %v248 = vld [vmem:[#allocation2 + $0xe8] sm:$0xff]
    %v249 = vld [vmem:[#allocation2 + $0xf0] sm:$0xff]
    %v250 = vld [vmem:[#allocation2 + $0xf8] sm:$0xff]
    %v283 = vunpack.c.l.b16 %v150
    %v284 = vunpack.c.h.b16 %v150
    %v285 = vunpack.c.l.b16 %v151
    %v286 = vunpack.c.h.b16 %v151
    %v287 = vunpack.c.l.b16 %v152
    %v288 = vunpack.c.h.b16 %v152
    %v289 = vunpack.c.l.b16 %v153
    %v290 = vunpack.c.h.b16 %v153
    %v291 = vunpack.c.l.b16 %v154
    %v292 = vunpack.c.h.b16 %v154
    %v293 = vunpack.c.l.b16 %v155
    %v294 = vunpack.c.h.b16 %v155
    %v295 = vunpack.c.l.b16 %v156
    %v296 = vunpack.c.h.b16 %v156
    %v297 = vunpack.c.l.b16 %v157
    %v298 = vunpack.c.h.b16 %v157
    %v299 = vunpack.c.l.b16 %v158
    %v300 = vunpack.c.h.b16 %v158
    %v301 = vunpack.c.l.b16 %v159
    %v302 = vunpack.c.h.b16 %v159
    %v303 = vunpack.c.l.b16 %v160
    %v304 = vunpack.c.h.b16 %v160
    %v305 = vunpack.c.l.b16 %v161
    %v306 = vunpack.c.h.b16 %v161
    %v307 = vunpack.c.l.b16 %v162
    %v308 = vunpack.c.h.b16 %v162
    %v309 = vunpack.c.l.b16 %v163
    %v310 = vunpack.c.h.b16 %v163
    %v311 = vunpack.c.l.b16 %v164
    %v312 = vunpack.c.h.b16 %v164
    %v313 = vunpack.c.l.b16 %v165
    %v314 = vunpack.c.h.b16 %v165
    %v315 = vunpack.c.l.b16 %v166
    %v316 = vunpack.c.h.b16 %v166
    %v317 = vunpack.c.l.b16 %v167
    %v318 = vunpack.c.h.b16 %v167
    %v319 = vunpack.c.l.b16 %v168
    %v320 = vunpack.c.h.b16 %v168
    %v321 = vunpack.c.l.b16 %v169
    %v322 = vunpack.c.h.b16 %v169
    %v323 = vunpack.c.l.b16 %v170
    %v324 = vunpack.c.h.b16 %v170
    %v325 = vunpack.c.l.b16 %v171
    %v326 = vunpack.c.h.b16 %v171
    %v327 = vunpack.c.l.b16 %v172
    %v328 = vunpack.c.h.b16 %v172
    %v329 = vunpack.c.l.b16 %v173
    %v330 = vunpack.c.h.b16 %v173
    %v331 = vunpack.c.l.b16 %v174
    %v332 = vunpack.c.h.b16 %v174
    %v333 = vunpack.c.l.b16 %v175
    %v334 = vunpack.c.h.b16 %v175
    %v335 = vunpack.c.l.b16 %v176
    %v336 = vunpack.c.h.b16 %v176
    %v337 = vunpack.c.l.b16 %v177
    %v338 = vunpack.c.h.b16 %v177
    %v339 = vunpack.c.l.b16 %v178
    %v340 = vunpack.c.h.b16 %v178
    %v341 = vunpack.c.l.b16 %v179
    %v342 = vunpack.c.h.b16 %v179
    %v343 = vunpack.c.l.b16 %v180
    %v344 = vunpack.c.h.b16 %v180
    %v345 = vunpack.c.l.b16 %v181
    %v346 = vunpack.c.h.b16 %v181
    %v347 = vpack.c.b16 %v285, %v283
    %v348 = vpack.c.b16 %v286, %v284
    %v349 = vpack.c.b16 %v289, %v287
    %v350 = vpack.c.b16 %v290, %v288
    %v351 = vpack.c.b16 %v293, %v291
    %v352 = vpack.c.b16 %v294, %v292
    %v353 = vpack.c.b16 %v297, %v295
    %v354 = vpack.c.b16 %v298, %v296
    %v355 = vpack.c.b16 %v301, %v299
    %v356 = vpack.c.b16 %v302, %v300
    %v357 = vpack.c.b16 %v305, %v303
    %v358 = vpack.c.b16 %v306, %v304
    %v359 = vpack.c.b16 %v309, %v307
    %v360 = vpack.c.b16 %v310, %v308
    %v361 = vpack.c.b16 %v313, %v311
    %v362 = vpack.c.b16 %v314, %v312
    %v363 = vpack.c.b16 %v317, %v315
    %v364 = vpack.c.b16 %v318, %v316
    %v365 = vpack.c.b16 %v321, %v319
    %v366 = vpack.c.b16 %v322, %v320
    %v367 = vpack.c.b16 %v325, %v323
    %v368 = vpack.c.b16 %v326, %v324
    %v369 = vpack.c.b16 %v329, %v327
    %v370 = vpack.c.b16 %v330, %v328
    %v371 = vpack.c.b16 %v333, %v331
    %v372 = vpack.c.b16 %v334, %v332
    %v373 = vpack.c.b16 %v337, %v335
    %v374 = vpack.c.b16 %v338, %v336
    %v375 = vpack.c.b16 %v341, %v339
    %v376 = vpack.c.b16 %v342, %v340
    %v377 = vpack.c.b16 %v345, %v343
    %v378 = vpack.c.b16 %v346, %v344
    %v443 = vunpack.c.l.b16 %v187
    %v444 = vunpack.c.l.b16 %v188
    %v445 = vunpack.c.l.b16 %v189
    %v446 = vunpack.c.l.b16 %v190
    %v447 = vunpack.c.l.b16 %v191
    %v448 = vunpack.c.l.b16 %v192
    %v449 = vunpack.c.l.b16 %v193
    %v450 = vunpack.c.l.b16 %v194
    %v451 = vunpack.c.l.b16 %v195
    %v452 = vunpack.c.l.b16 %v196
    %v453 = vunpack.c.l.b16 %v197
    %v454 = vunpack.c.l.b16 %v198
    %v455 = vunpack.c.l.b16 %v199
    %v456 = vunpack.c.l.b16 %v200
    %v457 = vunpack.c.l.b16 %v201
    %v458 = vunpack.c.l.b16 %v202
    %v459 = vunpack.c.l.b16 %v203
    %v460 = vunpack.c.l.b16 %v204
    %v461 = vunpack.c.l.b16 %v205
    %v462 = vunpack.c.l.b16 %v206
    %v463 = vunpack.c.l.b16 %v207
    %v464 = vunpack.c.l.b16 %v208
    %v465 = vunpack.c.l.b16 %v209
    %v466 = vunpack.c.l.b16 %v210
    %v467 = vunpack.c.l.b16 %v211
    %v468 = vunpack.c.l.b16 %v212
    %v469 = vunpack.c.l.b16 %v213
    %v470 = vunpack.c.l.b16 %v214
    %v471 = vunpack.c.l.b16 %v215
    %v472 = vunpack.c.l.b16 %v216
    %v473 = vunpack.c.l.b16 %v217
    %v474 = vunpack.c.l.b16 %v218
    %v475 = vpack.c.b16 %v444, %v443
    %v476 = vpack.c.b16 %v446, %v445
    %v477 = vpack.c.b16 %v448, %v447
    %v478 = vpack.c.b16 %v450, %v449
    %v479 = vpack.c.b16 %v452, %v451
    %v480 = vpack.c.b16 %v454, %v453
    %v481 = vpack.c.b16 %v456, %v455
    %v482 = vpack.c.b16 %v458, %v457
    %v483 = vpack.c.b16 %v460, %v459
    %v484 = vpack.c.b16 %v462, %v461
    %v485 = vpack.c.b16 %v464, %v463
    %v486 = vpack.c.b16 %v466, %v465
    %v487 = vpack.c.b16 %v468, %v467
    %v488 = vpack.c.b16 %v470, %v469
    %v489 = vpack.c.b16 %v472, %v471
    %v490 = vpack.c.b16 %v474, %v473
    %507 = vmatprep.subr.bf16.mxu0 0
    %508 = vmatpush1.bf16.msra.mxu0 %v475
    %509 = vmatprep.subr.bf16.mxu0 0
    %510 = vmatpush1.bf16.msra.mxu0 %v476
    %511 = vmatprep.subr.bf16.mxu0 0
    %512 = vmatpush1.bf16.msra.mxu0 %v477
    %513 = vmatprep.subr.bf16.mxu0 0
    %514 = vmatpush1.bf16.msra.mxu0 %v478
    %515 = vmatprep.subr.bf16.mxu0 0
    %516 = vmatpush1.bf16.msra.mxu0 %v479
    %517 = vmatprep.subr.bf16.mxu0 0
    %518 = vmatpush1.bf16.msra.mxu0 %v480
    %519 = vmatprep.subr.bf16.mxu0 0
    %520 = vmatpush1.bf16.msra.mxu0 %v481
    %521 = vmatprep.subr.bf16.mxu0 0
    %522 = vmatpush1.bf16.msra.mxu0 %v482
    %523 = vmatprep.subr.bf16.mxu0 0
    %524 = vmatpush1.bf16.msra.mxu0 %v483
    %525 = vmatprep.subr.bf16.mxu0 0
    %526 = vmatpush1.bf16.msra.mxu0 %v484
    %527 = vmatprep.subr.bf16.mxu0 0
    %528 = vmatpush1.bf16.msra.mxu0 %v485
    %529 = vmatprep.subr.bf16.mxu0 0
    %530 = vmatpush1.bf16.msra.mxu0 %v486
    %531 = vmatprep.subr.bf16.mxu0 0
    %532 = vmatpush1.bf16.msra.mxu0 %v487
    %533 = vmatprep.subr.bf16.mxu0 0
    %534 = vmatpush1.bf16.msra.mxu0 %v488
    %535 = vmatprep.subr.bf16.mxu0 0
    %536 = vmatpush1.bf16.msra.mxu0 %v489
    %537 = vmatprep.subr.bf16.mxu0 0
    %538 = vmatpush1.bf16.msra.mxu0 %v490
    %539 = vmatprep.mubr.bf16.mxu0 %v348
    %540 = vmatmul.mubr.bf16.gmra.mrb[0].mxu0 %v347
    %v541 = vpop.f32.mrb[0].mxu0
    %v542 = vadd.f32 0.0, %v541
    %v543 = vpop.f32.mrb[0].mxu0
    %v544 = vpop.f32.mrb[0].mxu0
    %v545 = vadd.f32 0.0, %v544
    %v546 = vpop.f32.mrb[0].mxu0
    %547 = vmatprep.mubr.bf16.mxu0 %v350
    %548 = vmatmul.mubr.bf16.gmra.mrb[0].mxu0 %v349
    %v549 = vpop.f32.mrb[0].mxu0
    %v550 = vadd.f32 0.0, %v549
    %v551 = vpop.f32.mrb[0].mxu0
    %v552 = vpop.f32.mrb[0].mxu0
    %v553 = vadd.f32 0.0, %v552
    %v554 = vpop.f32.mrb[0].mxu0
    %555 = vmatprep.mubr.bf16.mxu0 %v352
    %556 = vmatmul.mubr.bf16.gmra.mrb[0].mxu0 %v351
    %v557 = vpop.f32.mrb[0].mxu0
    %v558 = vadd.f32 0.0, %v557
    %v559 = vpop.f32.mrb[0].mxu0
    %v560 = vpop.f32.mrb[0].mxu0
    %v561 = vadd.f32 0.0, %v560
    %v562 = vpop.f32.mrb[0].mxu0
    %563 = vmatprep.mubr.bf16.mxu0 %v354
    %564 = vmatmul.mubr.bf16.gmra.mrb[0].mxu0 %v353
    %v565 = vpop.f32.mrb[0].mxu0
    %v566 = vadd.f32 0.0, %v565
    %v567 = vpop.f32.mrb[0].mxu0
    %v568 = vpop.f32.mrb[0].mxu0
    %v569 = vadd.f32 0.0, %v568
    %v570 = vpop.f32.mrb[0].mxu0
    %571 = vmatprep.mubr.bf16.mxu0 %v356
    %572 = vmatmul.mubr.bf16.gmra.mrb[0].mxu0 %v355
    %v573 = vpop.f32.mrb[0].mxu0
    %v574 = vadd.f32 0.0, %v573
    %v575 = vpop.f32.mrb[0].mxu0
    %v576 = vpop.f32.mrb[0].mxu0
    %v577 = vadd.f32 0.0, %v576
    %v578 = vpop.f32.mrb[0].mxu0
    %579 = vmatprep.mubr.bf16.mxu0 %v358
    %580 = vmatmul.mubr.bf16.gmra.mrb[0].mxu0 %v357
    %v581 = vpop.f32.mrb[0].mxu0
    %v582 = vadd.f32 0.0, %v581
    %v583 = vpop.f32.mrb[0].mxu0
    %v584 = vpop.f32.mrb[0].mxu0
    %v585 = vadd.f32 0.0, %v584
    %v586 = vpop.f32.mrb[0].mxu0
    %587 = vmatprep.mubr.bf16.mxu0 %v360
    %588 = vmatmul.mubr.bf16.gmra.mrb[0].mxu0 %v359
    %v589 = vpop.f32.mrb[0].mxu0
    %v590 = vadd.f32 0.0, %v589
    %v591 = vpop.f32.mrb[0].mxu0
    %v592 = vpop.f32.mrb[0].mxu0
    %v593 = vadd.f32 0.0, %v592
    %v594 = vpop.f32.mrb[0].mxu0
    %595 = vmatprep.mubr.bf16.mxu0 %v362
    %596 = vmatmul.mubr.bf16.gmra.mrb[0].mxu0 %v361
    %v597 = vpop.f32.mrb[0].mxu0
    %v598 = vadd.f32 0.0, %v597
    %v599 = vpop.f32.mrb[0].mxu0
    %v600 = vpop.f32.mrb[0].mxu0
    %v601 = vadd.f32 0.0, %v600
    %v602 = vpop.f32.mrb[0].mxu0
    %603 = vmatprep.mubr.bf16.mxu0 %v364
    %604 = vmatmul.mubr.bf16.gmra.mrb[0].mxu0 %v363
    %v605 = vpop.f32.mrb[0].mxu0
    %v606 = vadd.f32 0.0, %v605
    %v607 = vpop.f32.mrb[0].mxu0
    %v608 = vpop.f32.mrb[0].mxu0
    %v609 = vadd.f32 0.0, %v608
    %v610 = vpop.f32.mrb[0].mxu0
    %611 = vmatprep.mubr.bf16.mxu0 %v366
    %612 = vmatmul.mubr.bf16.gmra.mrb[0].mxu0 %v365
    %v613 = vpop.f32.mrb[0].mxu0
    %v614 = vadd.f32 0.0, %v613
    %v615 = vpop.f32.mrb[0].mxu0
    %v616 = vpop.f32.mrb[0].mxu0
    %v617 = vadd.f32 0.0, %v616
    %v618 = vpop.f32.mrb[0].mxu0
    %619 = vmatprep.mubr.bf16.mxu0 %v368
    %620 = vmatmul.mubr.bf16.gmra.mrb[0].mxu0 %v367
    %v621 = vpop.f32.mrb[0].mxu0
    %v622 = vadd.f32 0.0, %v621
    %v623 = vpop.f32.mrb[0].mxu0
    %v624 = vpop.f32.mrb[0].mxu0
    %v625 = vadd.f32 0.0, %v624
    %v626 = vpop.f32.mrb[0].mxu0
    %627 = vmatprep.mubr.bf16.mxu0 %v370
    %628 = vmatmul.mubr.bf16.gmra.mrb[0].mxu0 %v369
    %v629 = vpop.f32.mrb[0].mxu0
    %v630 = vadd.f32 0.0, %v629
    %v631 = vpop.f32.mrb[0].mxu0
    %v632 = vpop.f32.mrb[0].mxu0
    %v633 = vadd.f32 0.0, %v632
    %v634 = vpop.f32.mrb[0].mxu0
    %635 = vmatprep.mubr.bf16.mxu0 %v372
    %636 = vmatmul.mubr.bf16.gmra.mrb[0].mxu0 %v371
    %v637 = vpop.f32.mrb[0].mxu0
    %v638 = vadd.f32 0.0, %v637
    %v639 = vpop.f32.mrb[0].mxu0
    %v640 = vpop.f32.mrb[0].mxu0
    %v641 = vadd.f32 0.0, %v640
    %v642 = vpop.f32.mrb[0].mxu0
    %643 = vmatprep.mubr.bf16.mxu0 %v374
    %644 = vmatmul.mubr.bf16.gmra.mrb[0].mxu0 %v373
    %v645 = vpop.f32.mrb[0].mxu0
    %v646 = vadd.f32 0.0, %v645
    %v647 = vpop.f32.mrb[0].mxu0
    %v648 = vpop.f32.mrb[0].mxu0
    %v649 = vadd.f32 0.0, %v648
    %v650 = vpop.f32.mrb[0].mxu0
    %651 = vmatprep.mubr.bf16.mxu0 %v376
    %652 = vmatmul.mubr.bf16.gmra.mrb[0].mxu0 %v375
    %v653 = vpop.f32.mrb[0].mxu0
    %v654 = vadd.f32 0.0, %v653
    %v655 = vpop.f32.mrb[0].mxu0
    %v656 = vpop.f32.mrb[0].mxu0
    %v657 = vadd.f32 0.0, %v656
    %v658 = vpop.f32.mrb[0].mxu0
    %659 = vmatprep.mubr.bf16.mxu0 %v378
    %660 = vmatmul.mubr.bf16.gmra.mrb[0].mxu0 %v377
    %v661 = vpop.f32.mrb[0].mxu0
    %v662 = vadd.f32 0.0, %v661
    %v663 = vpop.f32.mrb[0].mxu0
    %v664 = vpop.f32.mrb[0].mxu0
    %v665 = vadd.f32 0.0, %v664
    %v666 = vpop.f32.mrb[0].mxu0
    %667 = vdwg.mxu0
    %v668 = vadd.f32 %v219, %v542
    %v669 = vadd.f32 %v220, %v545
    %v670 = vadd.f32 %v221, %v550
    %v671 = vadd.f32 %v222, %v553
    %v672 = vadd.f32 %v223, %v558
    %v673 = vadd.f32 %v224, %v561
    %v674 = vadd.f32 %v225, %v566
    %v675 = vadd.f32 %v226, %v569
    %v676 = vadd.f32 %v227, %v574
    %v677 = vadd.f32 %v228, %v577
    %v678 = vadd.f32 %v229, %v582
    %v679 = vadd.f32 %v230, %v585
    %v680 = vadd.f32 %v231, %v590
    %v681 = vadd.f32 %v232, %v593
    %v682 = vadd.f32 %v233, %v598
    %v683 = vadd.f32 %v234, %v601
    %v684 = vadd.f32 %v235, %v606
    %v685 = vadd.f32 %v236, %v609
    %v686 = vadd.f32 %v237, %v614
    %v687 = vadd.f32 %v238, %v617
    %v688 = vadd.f32 %v239, %v622
    %v689 = vadd.f32 %v240, %v625
    %v690 = vadd.f32 %v241, %v630
    %v691 = vadd.f32 %v242, %v633
    %v692 = vadd.f32 %v243, %v638
    %v693 = vadd.f32 %v244, %v641
    %v694 = vadd.f32 %v245, %v646
    %v695 = vadd.f32 %v246, %v649
    %v696 = vadd.f32 %v247, %v654
    %v697 = vadd.f32 %v248, %v657
    %v698 = vadd.f32 %v249, %v662
    %v699 = vadd.f32 %v250, %v665
    %700 = vst [vmem:[#allocation2] sm:$0xff] %v668
    %701 = vst [vmem:[#allocation2 + $0x8] sm:$0xff] %v669
    %702 = vst [vmem:[#allocation2 + $0x10] sm:$0xff] %v670
    %703 = vst [vmem:[#allocation2 + $0x18] sm:$0xff] %v671
    %704 = vst [vmem:[#allocation2 + $0x20] sm:$0xff] %v672
    %705 = vst [vmem:[#allocation2 + $0x28] sm:$0xff] %v673
    %706 = vst [vmem:[#allocation2 + $0x30] sm:$0xff] %v674
    %707 = vst [vmem:[#allocation2 + $0x38] sm:$0xff] %v675
    %708 = vst [vmem:[#allocation2 + $0x40] sm:$0xff] %v676
    %709 = vst [vmem:[#allocation2 + $0x48] sm:$0xff] %v677
    %710 = vst [vmem:[#allocation2 + $0x50] sm:$0xff] %v678
    %711 = vst [vmem:[#allocation2 + $0x58] sm:$0xff] %v679
    %712 = vst [vmem:[#allocation2 + $0x60] sm:$0xff] %v680
    %713 = vst [vmem:[#allocation2 + $0x68] sm:$0xff] %v681
    %714 = vst [vmem:[#allocation2 + $0x70] sm:$0xff] %v682
    %715 = vst [vmem:[#allocation2 + $0x78] sm:$0xff] %v683
    %716 = vst [vmem:[#allocation2 + $0x80] sm:$0xff] %v684
    %717 = vst [vmem:[#allocation2 + $0x88] sm:$0xff] %v685
    %718 = vst [vmem:[#allocation2 + $0x90] sm:$0xff] %v686
    %719 = vst [vmem:[#allocation2 + $0x98] sm:$0xff] %v687
    %720 = vst [vmem:[#allocation2 + $0xa0] sm:$0xff] %v688
    %721 = vst [vmem:[#allocation2 + $0xa8] sm:$0xff] %v689
    %722 = vst [vmem:[#allocation2 + $0xb0] sm:$0xff] %v690
    %723 = vst [vmem:[#allocation2 + $0xb8] sm:$0xff] %v691
    %724 = vst [vmem:[#allocation2 + $0xc0] sm:$0xff] %v692
    %725 = vst [vmem:[#allocation2 + $0xc8] sm:$0xff] %v693
    %726 = vst [vmem:[#allocation2 + $0xd0] sm:$0xff] %v694
    %727 = vst [vmem:[#allocation2 + $0xd8] sm:$0xff] %v695
    %728 = vst [vmem:[#allocation2 + $0xe0] sm:$0xff] %v696
    %729 = vst [vmem:[#allocation2 + $0xe8] sm:$0xff] %v697
    %730 = vst [vmem:[#allocation2 + $0xf0] sm:$0xff] %v698
    %731 = vst [vmem:[#allocation2 + $0xf8] sm:$0xff] %v699
    %v732 = vld [vmem:[#allocation3] sm:$0xff]
    %v733 = vld [vmem:[#allocation3 + $0x8] sm:$0xff]
    %v734 = vld [vmem:[#allocation3 + $0x10] sm:$0xff]
    %v735 = vld [vmem:[#allocation3 + $0x18] sm:$0xff]
    %v736 = vld [vmem:[#allocation3 + $0x20] sm:$0xff]
    %v737 = vld [vmem:[#allocation3 + $0x28] sm:$0xff]
    %v738 = vld [vmem:[#allocation3 + $0x30] sm:$0xff]
    %v739 = vld [vmem:[#allocation3 + $0x38] sm:$0xff]
    %v740 = vld [vmem:[#allocation3 + $0x40] sm:$0xff]
    %v741 = vld [vmem:[#allocation3 + $0x48] sm:$0xff]
    %v742 = vld [vmem:[#allocation3 + $0x50] sm:$0xff]
    %v743 = vld [vmem:[#allocation3 + $0x58] sm:$0xff]
    %v744 = vld [vmem:[#allocation3 + $0x60] sm:$0xff]
    %v745 = vld [vmem:[#allocation3 + $0x68] sm:$0xff]
    %v746 = vld [vmem:[#allocation3 + $0x70] sm:$0xff]
    %v747 = vld [vmem:[#allocation3 + $0x78] sm:$0xff]
    %v748 = vld [vmem:[#allocation3 + $0x80] sm:$0xff]
    %v749 = vld [vmem:[#allocation3 + $0x88] sm:$0xff]
    %v750 = vld [vmem:[#allocation3 + $0x90] sm:$0xff]
    %v751 = vld [vmem:[#allocation3 + $0x98] sm:$0xff]
    %v752 = vld [vmem:[#allocation3 + $0xa0] sm:$0xff]
    %v753 = vld [vmem:[#allocation3 + $0xa8] sm:$0xff]
    %v754 = vld [vmem:[#allocation3 + $0xb0] sm:$0xff]
    %v755 = vld [vmem:[#allocation3 + $0xb8] sm:$0xff]
    %v756 = vld [vmem:[#allocation3 + $0xc0] sm:$0xff]
    %v757 = vld [vmem:[#allocation3 + $0xc8] sm:$0xff]
    %v758 = vld [vmem:[#allocation3 + $0xd0] sm:$0xff]
    %v759 = vld [vmem:[#allocation3 + $0xd8] sm:$0xff]
    %v760 = vld [vmem:[#allocation3 + $0xe0] sm:$0xff]
    %v761 = vld [vmem:[#allocation3 + $0xe8] sm:$0xff]
    %v762 = vld [vmem:[#allocation3 + $0xf0] sm:$0xff]
    %v763 = vld [vmem:[#allocation3 + $0xf8] sm:$0xff]
    %v764 = vunpack.c.l.bf16 %v150
    %v765 = vunpack.c.h.bf16 %v150
    %v766 = vunpack.c.l.bf16 %v151
    %v767 = vunpack.c.h.bf16 %v151
    %v768 = vunpack.c.l.bf16 %v152
    %v769 = vunpack.c.h.bf16 %v152
    %v770 = vunpack.c.l.bf16 %v153
    %v771 = vunpack.c.h.bf16 %v153
    %v772 = vunpack.c.l.bf16 %v154
    %v773 = vunpack.c.h.bf16 %v154
    %v774 = vunpack.c.l.bf16 %v155
    %v775 = vunpack.c.h.bf16 %v155
    %v776 = vunpack.c.l.bf16 %v156
    %v777 = vunpack.c.h.bf16 %v156
    %v778 = vunpack.c.l.bf16 %v157
    %v779 = vunpack.c.h.bf16 %v157
    %v780 = vunpack.c.l.bf16 %v158
    %v781 = vunpack.c.h.bf16 %v158
    %v782 = vunpack.c.l.bf16 %v159
    %v783 = vunpack.c.h.bf16 %v159
    %v784 = vunpack.c.l.bf16 %v160
    %v785 = vunpack.c.h.bf16 %v160
    %v786 = vunpack.c.l.bf16 %v161
    %v787 = vunpack.c.h.bf16 %v161
    %v788 = vunpack.c.l.bf16 %v162
    %v789 = vunpack.c.h.bf16 %v162
    %v790 = vunpack.c.l.bf16 %v163
    %v791 = vunpack.c.h.bf16 %v163
    %v792 = vunpack.c.l.bf16 %v164
    %v793 = vunpack.c.h.bf16 %v164
    %v794 = vunpack.c.l.bf16 %v165
    %v795 = vunpack.c.h.bf16 %v165
    %v796 = vunpack.c.l.bf16 %v166
    %v797 = vunpack.c.h.bf16 %v166
    %v798 = vunpack.c.l.bf16 %v167
    %v799 = vunpack.c.h.bf16 %v167
    %v800 = vunpack.c.l.bf16 %v168
    %v801 = vunpack.c.h.bf16 %v168
    %v802 = vunpack.c.l.bf16 %v169
    %v803 = vunpack.c.h.bf16 %v169
    %v804 = vunpack.c.l.bf16 %v170
    %v805 = vunpack.c.h.bf16 %v170
    %v806 = vunpack.c.l.bf16 %v171
    %v807 = vunpack.c.h.bf16 %v171
    %v808 = vunpack.c.l.bf16 %v172
    %v809 = vunpack.c.h.bf16 %v172
    %v810 = vunpack.c.l.bf16 %v173
    %v811 = vunpack.c.h.bf16 %v173
    %v812 = vunpack.c.l.bf16 %v174
    %v813 = vunpack.c.h.bf16 %v174
    %v814 = vunpack.c.l.bf16 %v175
    %v815 = vunpack.c.h.bf16 %v175
    %v816 = vunpack.c.l.bf16 %v176
    %v817 = vunpack.c.h.bf16 %v176
    %v818 = vunpack.c.l.bf16 %v177
    %v819 = vunpack.c.h.bf16 %v177
    %v820 = vunpack.c.l.bf16 %v178
    %v821 = vunpack.c.h.bf16 %v178
    %v822 = vunpack.c.l.bf16 %v179
    %v823 = vunpack.c.h.bf16 %v179
    %v824 = vunpack.c.l.bf16 %v180
    %v825 = vunpack.c.h.bf16 %v180
    %v826 = vunpack.c.l.bf16 %v181
    %v827 = vunpack.c.h.bf16 %v181
    %v828 = vadd.f32 %v764, %v765
    %829 = vadd.xlane.f32.xlu0 %v828
    %v830 = vpop.xlane.xlu0 %829
    %v831 = vadd.f32 %v766, %v767
    %832 = vadd.xlane.f32.xlu0 %v831
    %v833 = vpop.xlane.xlu0 %832
    %v834 = vadd.f32 %v768, %v769
    %835 = vadd.xlane.f32.xlu0 %v834
    %v836 = vpop.xlane.xlu0 %835
    %v837 = vadd.f32 %v770, %v771
    %838 = vadd.xlane.f32.xlu0 %v837
    %v839 = vpop.xlane.xlu0 %838
    %v840 = vadd.f32 %v772, %v773
    %841 = vadd.xlane.f32.xlu0 %v840
    %v842 = vpop.xlane.xlu0 %841
    %v843 = vadd.f32 %v774, %v775
    %844 = vadd.xlane.f32.xlu0 %v843
    %v845 = vpop.xlane.xlu0 %844
    %v846 = vadd.f32 %v776, %v777
    %847 = vadd.xlane.f32.xlu0 %v846
    %v848 = vpop.xlane.xlu0 %847
    %v849 = vadd.f32 %v778, %v779
    %850 = vadd.xlane.f32.xlu0 %v849
    %v851 = vpop.xlane.xlu0 %850
    %v852 = vadd.f32 %v780, %v781
    %853 = vadd.xlane.f32.xlu0 %v852
    %v854 = vpop.xlane.xlu0 %853
    %v855 = vadd.f32 %v782, %v783
    %856 = vadd.xlane.f32.xlu0 %v855
    %v857 = vpop.xlane.xlu0 %856
    %v858 = vadd.f32 %v784, %v785
    %859 = vadd.xlane.f32.xlu0 %v858
    %v860 = vpop.xlane.xlu0 %859
    %v861 = vadd.f32 %v786, %v787
    %862 = vadd.xlane.f32.xlu0 %v861
    %v863 = vpop.xlane.xlu0 %862
    %v864 = vadd.f32 %v788, %v789
    %865 = vadd.xlane.f32.xlu0 %v864
    %v866 = vpop.xlane.xlu0 %865
    %v867 = vadd.f32 %v790, %v791
    %868 = vadd.xlane.f32.xlu0 %v867
    %v869 = vpop.xlane.xlu0 %868
    %v870 = vadd.f32 %v792, %v793
    %871 = vadd.xlane.f32.xlu0 %v870
    %v872 = vpop.xlane.xlu0 %871
    %v873 = vadd.f32 %v794, %v795
    %874 = vadd.xlane.f32.xlu0 %v873
    %v875 = vpop.xlane.xlu0 %874
    %v876 = vadd.f32 %v796, %v797
    %877 = vadd.xlane.f32.xlu0 %v876
    %v878 = vpop.xlane.xlu0 %877
    %v879 = vadd.f32 %v798, %v799
    %880 = vadd.xlane.f32.xlu0 %v879
    %v881 = vpop.xlane.xlu0 %880
    %v882 = vadd.f32 %v800, %v801
    %883 = vadd.xlane.f32.xlu0 %v882
    %v884 = vpop.xlane.xlu0 %883
    %v885 = vadd.f32 %v802, %v803
    %886 = vadd.xlane.f32.xlu0 %v885
    %v887 = vpop.xlane.xlu0 %886
    %v888 = vadd.f32 %v804, %v805
    %889 = vadd.xlane.f32.xlu0 %v888
    %v890 = vpop.xlane.xlu0 %889
    %v891 = vadd.f32 %v806, %v807
    %892 = vadd.xlane.f32.xlu0 %v891
    %v893 = vpop.xlane.xlu0 %892
    %v894 = vadd.f32 %v808, %v809
    %895 = vadd.xlane.f32.xlu0 %v894
    %v896 = vpop.xlane.xlu0 %895
    %v897 = vadd.f32 %v810, %v811
    %898 = vadd.xlane.f32.xlu0 %v897
    %v899 = vpop.xlane.xlu0 %898
    %v900 = vadd.f32 %v812, %v813
    %901 = vadd.xlane.f32.xlu0 %v900
    %v902 = vpop.xlane.xlu0 %901
    %v903 = vadd.f32 %v814, %v815
    %904 = vadd.xlane.f32.xlu0 %v903
    %v905 = vpop.xlane.xlu0 %904
    %v906 = vadd.f32 %v816, %v817
    %907 = vadd.xlane.f32.xlu0 %v906
    %v908 = vpop.xlane.xlu0 %907
    %v909 = vadd.f32 %v818, %v819
    %910 = vadd.xlane.f32.xlu0 %v909
    %v911 = vpop.xlane.xlu0 %910
    %v912 = vadd.f32 %v820, %v821
    %913 = vadd.xlane.f32.xlu0 %v912
    %v914 = vpop.xlane.xlu0 %913
    %v915 = vadd.f32 %v822, %v823
    %916 = vadd.xlane.f32.xlu0 %v915
    %v917 = vpop.xlane.xlu0 %916
    %v918 = vadd.f32 %v824, %v825
    %919 = vadd.xlane.f32.xlu0 %v918
    %v920 = vpop.xlane.xlu0 %919
    %v921 = vadd.f32 %v826, %v827
    %922 = vadd.xlane.f32.xlu0 %v921
    %v923 = vpop.xlane.xlu0 %922
    %v924 = vadd.f32 %v732, %v830
    %v925 = vadd.f32 %v733, %v833
    %v926 = vadd.f32 %v734, %v836
    %v927 = vadd.f32 %v735, %v839
    %v928 = vadd.f32 %v736, %v842
    %v929 = vadd.f32 %v737, %v845
    %v930 = vadd.f32 %v738, %v848
    %v931 = vadd.f32 %v739, %v851
    %v932 = vadd.f32 %v740, %v854
    %v933 = vadd.f32 %v741, %v857
    %v934 = vadd.f32 %v742, %v860
    %v935 = vadd.f32 %v743, %v863
    %v936 = vadd.f32 %v744, %v866
    %v937 = vadd.f32 %v745, %v869
    %v938 = vadd.f32 %v746, %v872
    %v939 = vadd.f32 %v747, %v875
    %v940 = vadd.f32 %v748, %v878
    %v941 = vadd.f32 %v749, %v881
    %v942 = vadd.f32 %v750, %v884
    %v943 = vadd.f32 %v751, %v887
    %v944 = vadd.f32 %v752, %v890
    %v945 = vadd.f32 %v753, %v893
    %v946 = vadd.f32 %v754, %v896
    %v947 = vadd.f32 %v755, %v899
    %v948 = vadd.f32 %v756, %v902
    %v949 = vadd.f32 %v757, %v905
    %v950 = vadd.f32 %v758, %v908
    %v951 = vadd.f32 %v759, %v911
    %v952 = vadd.f32 %v760, %v914
    %v953 = vadd.f32 %v761, %v917
    %v954 = vadd.f32 %v762, %v920
    %v955 = vadd.f32 %v763, %v923
    %vm956 = vcmask 7168
    %957 = vst.msk [vmem:[#allocation3] sm:$0xff] %vm956, %v924
    %958 = vst.msk [vmem:[#allocation3 + $0x8] sm:$0xff] %vm956, %v925
    %959 = vst.msk [vmem:[#allocation3 + $0x10] sm:$0xff] %vm956, %v926
    %960 = vst.msk [vmem:[#allocation3 + $0x18] sm:$0xff] %vm956, %v927
    %961 = vst.msk [vmem:[#allocation3 + $0x20] sm:$0xff] %vm956, %v928
    %962 = vst.msk [vmem:[#allocation3 + $0x28] sm:$0xff] %vm956, %v929
    %963 = vst.msk [vmem:[#allocation3 + $0x30] sm:$0xff] %vm956, %v930
    %964 = vst.msk [vmem:[#allocation3 + $0x38] sm:$0xff] %vm956, %v931
    %965 = vst.msk [vmem:[#allocation3 + $0x40] sm:$0xff] %vm956, %v932
    %966 = vst.msk [vmem:[#allocation3 + $0x48] sm:$0xff] %vm956, %v933
    %967 = vst.msk [vmem:[#allocation3 + $0x50] sm:$0xff] %vm956, %v934
    %968 = vst.msk [vmem:[#allocation3 + $0x58] sm:$0xff] %vm956, %v935
    %969 = vst.msk [vmem:[#allocation3 + $0x60] sm:$0xff] %vm956, %v936
    %970 = vst.msk [vmem:[#allocation3 + $0x68] sm:$0xff] %vm956, %v937
    %971 = vst.msk [vmem:[#allocation3 + $0x70] sm:$0xff] %vm956, %v938
    %972 = vst.msk [vmem:[#allocation3 + $0x78] sm:$0xff] %vm956, %v939
    %973 = vst.msk [vmem:[#allocation3 + $0x80] sm:$0xff] %vm956, %v940
    %974 = vst.msk [vmem:[#allocation3 + $0x88] sm:$0xff] %vm956, %v941
    %975 = vst.msk [vmem:[#allocation3 + $0x90] sm:$0xff] %vm956, %v942
    %976 = vst.msk [vmem:[#allocation3 + $0x98] sm:$0xff] %vm956, %v943
    %977 = vst.msk [vmem:[#allocation3 + $0xa0] sm:$0xff] %vm956, %v944
    %978 = vst.msk [vmem:[#allocation3 + $0xa8] sm:$0xff] %vm956, %v945
    %979 = vst.msk [vmem:[#allocation3 + $0xb0] sm:$0xff] %vm956, %v946
    %980 = vst.msk [vmem:[#allocation3 + $0xb8] sm:$0xff] %vm956, %v947
    %981 = vst.msk [vmem:[#allocation3 + $0xc0] sm:$0xff] %vm956, %v948
    %982 = vst.msk [vmem:[#allocation3 + $0xc8] sm:$0xff] %vm956, %v949
    %983 = vst.msk [vmem:[#allocation3 + $0xd0] sm:$0xff] %vm956, %v950
    %984 = vst.msk [vmem:[#allocation3 + $0xd8] sm:$0xff] %vm956, %v951
    %985 = vst.msk [vmem:[#allocation3 + $0xe0] sm:$0xff] %vm956, %v952
    %986 = vst.msk [vmem:[#allocation3 + $0xe8] sm:$0xff] %vm956, %v953
    %987 = vst.msk [vmem:[#allocation3 + $0xf0] sm:$0xff] %vm956, %v954
    %988 = vst.msk [vmem:[#allocation3 + $0xf8] sm:$0xff] %vm956, %v955
    // Predicated region
    $region42: #{tpu_custom_call.1} parent=1 // pred_check
      %p989 = pneg %p81
    $region43: #{tpu_custom_call.1} parent=1 // pred_check_branch
      %991 = sbr.rel (%p989) target = $region45
    $region44: #{tpu_custom_call.1} parent=1 // pred_region
      %v992 = vld [vmem:[#allocation3] sm:$0xff]
      %v993 = vld [vmem:[#allocation3 + $0x8] sm:$0xff]
      %v994 = vld [vmem:[#allocation3 + $0x10] sm:$0xff]
      %v995 = vld [vmem:[#allocation3 + $0x18] sm:$0xff]
      %v996 = vld [vmem:[#allocation3 + $0x20] sm:$0xff]
      %v997 = vld [vmem:[#allocation3 + $0x28] sm:$0xff]
      %v998 = vld [vmem:[#allocation3 + $0x30] sm:$0xff]
      %v999 = vld [vmem:[#allocation3 + $0x38] sm:$0xff]
      %v1000 = vld [vmem:[#allocation3 + $0x40] sm:$0xff]
      %v1001 = vld [vmem:[#allocation3 + $0x48] sm:$0xff]
      %v1002 = vld [vmem:[#allocation3 + $0x50] sm:$0xff]
      %v1003 = vld [vmem:[#allocation3 + $0x58] sm:$0xff]
      %v1004 = vld [vmem:[#allocation3 + $0x60] sm:$0xff]
      %v1005 = vld [vmem:[#allocation3 + $0x68] sm:$0xff]
      %v1006 = vld [vmem:[#allocation3 + $0x70] sm:$0xff]
      %v1007 = vld [vmem:[#allocation3 + $0x78] sm:$0xff]
      %v1008 = vld [vmem:[#allocation3 + $0x80] sm:$0xff]
      %v1009 = vld [vmem:[#allocation3 + $0x88] sm:$0xff]
      %v1010 = vld [vmem:[#allocation3 + $0x90] sm:$0xff]
      %v1011 = vld [vmem:[#allocation3 + $0x98] sm:$0xff]
      %v1012 = vld [vmem:[#allocation3 + $0xa0] sm:$0xff]
      %v1013 = vld [vmem:[#allocation3 + $0xa8] sm:$0xff]
      %v1014 = vld [vmem:[#allocation3 + $0xb0] sm:$0xff]
      %v1015 = vld [vmem:[#allocation3 + $0xb8] sm:$0xff]
      %v1016 = vld [vmem:[#allocation3 + $0xc0] sm:$0xff]
      %v1017 = vld [vmem:[#allocation3 + $0xc8] sm:$0xff]
      %v1018 = vld [vmem:[#allocation3 + $0xd0] sm:$0xff]
      %v1019 = vld [vmem:[#allocation3 + $0xd8] sm:$0xff]
      %v1020 = vld [vmem:[#allocation3 + $0xe0] sm:$0xff]
      %v1021 = vld [vmem:[#allocation3 + $0xe8] sm:$0xff]
      %v1022 = vld [vmem:[#allocation3 + $0xf0] sm:$0xff]
      %v1023 = vld [vmem:[#allocation3 + $0xf8] sm:$0xff]
      %v1024 = vmax.f32 %v992, 1.0
      %v1025 = vmax.f32 %v993, 1.0
      %v1026 = vmax.f32 %v994, 1.0
      %v1027 = vmax.f32 %v995, 1.0
      %v1028 = vmax.f32 %v996, 1.0
      %v1029 = vmax.f32 %v997, 1.0
      %v1030 = vmax.f32 %v998, 1.0
      %v1031 = vmax.f32 %v999, 1.0
      %v1032 = vmax.f32 %v1000, 1.0
      %v1033 = vmax.f32 %v1001, 1.0
      %v1034 = vmax.f32 %v1002, 1.0
      %v1035 = vmax.f32 %v1003, 1.0
      %v1036 = vmax.f32 %v1004, 1.0
      %v1037 = vmax.f32 %v1005, 1.0
      %v1038 = vmax.f32 %v1006, 1.0
      %v1039 = vmax.f32 %v1007, 1.0
      %v1040 = vmax.f32 %v1008, 1.0
      %v1041 = vmax.f32 %v1009, 1.0
      %v1042 = vmax.f32 %v1010, 1.0
      %v1043 = vmax.f32 %v1011, 1.0
      %v1044 = vmax.f32 %v1012, 1.0
      %v1045 = vmax.f32 %v1013, 1.0
      %v1046 = vmax.f32 %v1014, 1.0
      %v1047 = vmax.f32 %v1015, 1.0
      %v1048 = vmax.f32 %v1016, 1.0
      %v1049 = vmax.f32 %v1017, 1.0
      %v1050 = vmax.f32 %v1018, 1.0
      %v1051 = vmax.f32 %v1019, 1.0
      %v1052 = vmax.f32 %v1020, 1.0
      %v1053 = vmax.f32 %v1021, 1.0
      %v1054 = vmax.f32 %v1022, 1.0
      %v1055 = vmax.f32 %v1023, 1.0
      %v1056 = vrcp.pop %v1024
      %v1057 = vmul.f32 1.0, %v1056
      %v1058 = vrcp.pop %v1025
      %v1059 = vmul.f32 1.0, %v1058
      %v1060 = vrcp.pop %v1026
      %v1061 = vmul.f32 1.0, %v1060
      %v1062 = vrcp.pop %v1027
      %v1063 = vmul.f32 1.0, %v1062
      %v1064 = vrcp.pop %v1028
      %v1065 = vmul.f32 1.0, %v1064
      %v1066 = vrcp.pop %v1029
      %v1067 = vmul.f32 1.0, %v1066
      %v1068 = vrcp.pop %v1030
      %v1069 = vmul.f32 1.0, %v1068
      %v1070 = vrcp.pop %v1031
      %v1071 = vmul.f32 1.0, %v1070
      %v1072 = vrcp.pop %v1032
      %v1073 = vmul.f32 1.0, %v1072
      %v1074 = vrcp.pop %v1033
      %v1075 = vmul.f32 1.0, %v1074
      %v1076 = vrcp.pop %v1034
      %v1077 = vmul.f32 1.0, %v1076
      %v1078 = vrcp.pop %v1035
      %v1079 = vmul.f32 1.0, %v1078
      %v1080 = vrcp.pop %v1036
      %v1081 = vmul.f32 1.0, %v1080
      %v1082 = vrcp.pop %v1037
      %v1083 = vmul.f32 1.0, %v1082
      %v1084 = vrcp.pop %v1038
      %v1085 = vmul.f32 1.0, %v1084
      %v1086 = vrcp.pop %v1039
      %v1087 = vmul.f32 1.0, %v1086
      %v1088 = vrcp.pop %v1040
      %v1089 = vmul.f32 1.0, %v1088
      %v1090 = vrcp.pop %v1041
      %v1091 = vmul.f32 1.0, %v1090
      %v1092 = vrcp.pop %v1042
      %v1093 = vmul.f32 1.0, %v1092
      %v1094 = vrcp.pop %v1043
      %v1095 = vmul.f32 1.0, %v1094
      %v1096 = vrcp.pop %v1044
      %v1097 = vmul.f32 1.0, %v1096
      %v1098 = vrcp.pop %v1045
      %v1099 = vmul.f32 1.0, %v1098
      %v1100 = vrcp.pop %v1046
      %v1101 = vmul.f32 1.0, %v1100
      %v1102 = vrcp.pop %v1047
      %v1103 = vmul.f32 1.0, %v1102
      %v1104 = vrcp.pop %v1048
      %v1105 = vmul.f32 1.0, %v1104
      %v1106 = vrcp.pop %v1049
      %v1107 = vmul.f32 1.0, %v1106
      %v1108 = vrcp.pop %v1050
      %v1109 = vmul.f32 1.0, %v1108
      %v1110 = vrcp.pop %v1051
      %v1111 = vmul.f32 1.0, %v1110
      %v1112 = vrcp.pop %v1052
      %v1113 = vmul.f32 1.0, %v1112
      %v1114 = vrcp.pop %v1053
      %v1115 = vmul.f32 1.0, %v1114
      %v1116 = vrcp.pop %v1054
      %v1117 = vmul.f32 1.0, %v1116
      %v1118 = vrcp.pop %v1055
      %v1119 = vmul.f32 1.0, %v1118
      %1120 = vst.msk [vmem:[%s7] sm:$0xff] %vm956, %v1057
      %1121 = vst.msk [vmem:[%s7 + $0x8] sm:$0xff] %vm956, %v1059
      %1122 = vst.msk [vmem:[%s7 + $0x10] sm:$0xff] %vm956, %v1061
      %1123 = vst.msk [vmem:[%s7 + $0x18] sm:$0xff] %vm956, %v1063
      %1124 = vst.msk [vmem:[%s7 + $0x20] sm:$0xff] %vm956, %v1065
      %1125 = vst.msk [vmem:[%s7 + $0x28] sm:$0xff] %vm956, %v1067
      %1126 = vst.msk [vmem:[%s7 + $0x30] sm:$0xff] %vm956, %v1069
      %1127 = vst.msk [vmem:[%s7 + $0x38] sm:$0xff] %vm956, %v1071
      %1128 = vst.msk [vmem:[%s7 + $0x40] sm:$0xff] %vm956, %v1073
      %1129 = vst.msk [vmem:[%s7 + $0x48] sm:$0xff] %vm956, %v1075
      %1130 = vst.msk [vmem:[%s7 + $0x50] sm:$0xff] %vm956, %v1077
      %1131 = vst.msk [vmem:[%s7 + $0x58] sm:$0xff] %vm956, %v1079
      %1132 = vst.msk [vmem:[%s7 + $0x60] sm:$0xff] %vm956, %v1081
      %1133 = vst.msk [vmem:[%s7 + $0x68] sm:$0xff] %vm956, %v1083
      %1134 = vst.msk [vmem:[%s7 + $0x70] sm:$0xff] %vm956, %v1085
      %1135 = vst.msk [vmem:[%s7 + $0x78] sm:$0xff] %vm956, %v1087
      %1136 = vst.msk [vmem:[%s7 + $0x80] sm:$0xff] %vm956, %v1089
      %1137 = vst.msk [vmem:[%s7 + $0x88] sm:$0xff] %vm956, %v1091
      %1138 = vst.msk [vmem:[%s7 + $0x90] sm:$0xff] %vm956, %v1093
      %1139 = vst.msk [vmem:[%s7 + $0x98] sm:$0xff] %vm956, %v1095
      %1140 = vst.msk [vmem:[%s7 + $0xa0] sm:$0xff] %vm956, %v1097
      %1141 = vst.msk [vmem:[%s7 + $0xa8] sm:$0xff] %vm956, %v1099
      %1142 = vst.msk [vmem:[%s7 + $0xb0] sm:$0xff] %vm956, %v1101
      %1143 = vst.msk [vmem:[%s7 + $0xb8] sm:$0xff] %vm956, %v1103
      %1144 = vst.msk [vmem:[%s7 + $0xc0] sm:$0xff] %vm956, %v1105
      %1145 = vst.msk [vmem:[%s7 + $0xc8] sm:$0xff] %vm956, %v1107
      %1146 = vst.msk [vmem:[%s7 + $0xd0] sm:$0xff] %vm956, %v1109
      %1147 = vst.msk [vmem:[%s7 + $0xd8] sm:$0xff] %vm956, %v1111
      %1148 = vst.msk [vmem:[%s7 + $0xe0] sm:$0xff] %vm956, %v1113
      %1149 = vst.msk [vmem:[%s7 + $0xe8] sm:$0xff] %vm956, %v1115
      %1150 = vst.msk [vmem:[%s7 + $0xf0] sm:$0xff] %vm956, %v1117
      %1151 = vst.msk [vmem:[%s7 + $0xf8] sm:$0xff] %vm956, %v1119
      %v1152 = vld [vmem:[#allocation2] sm:$0xff]
      %v1153 = vld [vmem:[#allocation2 + $0x8] sm:$0xff]
      %v1154 = vld [vmem:[#allocation2 + $0x10] sm:$0xff]
      %v1155 = vld [vmem:[#allocation2 + $0x18] sm:$0xff]
      %v1156 = vld [vmem:[#allocation2 + $0x20] sm:$0xff]
      %v1157 = vld [vmem:[#allocation2 + $0x28] sm:$0xff]
      %v1158 = vld [vmem:[#allocation2 + $0x30] sm:$0xff]
      %v1159 = vld [vmem:[#allocation2 + $0x38] sm:$0xff]
      %v1160 = vld [vmem:[#allocation2 + $0x40] sm:$0xff]
      %v1161 = vld [vmem:[#allocation2 + $0x48] sm:$0xff]
      %v1162 = vld [vmem:[#allocation2 + $0x50] sm:$0xff]
      %v1163 = vld [vmem:[#allocation2 + $0x58] sm:$0xff]
      %v1164 = vld [vmem:[#allocation2 + $0x60] sm:$0xff]
      %v1165 = vld [vmem:[#allocation2 + $0x68] sm:$0xff]
      %v1166 = vld [vmem:[#allocation2 + $0x70] sm:$0xff]
      %v1167 = vld [vmem:[#allocation2 + $0x78] sm:$0xff]
      %v1168 = vld [vmem:[#allocation2 + $0x80] sm:$0xff]
      %v1169 = vld [vmem:[#allocation2 + $0x88] sm:$0xff]
      %v1170 = vld [vmem:[#allocation2 + $0x90] sm:$0xff]
      %v1171 = vld [vmem:[#allocation2 + $0x98] sm:$0xff]
      %v1172 = vld [vmem:[#allocation2 + $0xa0] sm:$0xff]
      %v1173 = vld [vmem:[#allocation2 + $0xa8] sm:$0xff]
      %v1174 = vld [vmem:[#allocation2 + $0xb0] sm:$0xff]
      %v1175 = vld [vmem:[#allocation2 + $0xb8] sm:$0xff]
      %v1176 = vld [vmem:[#allocation2 + $0xc0] sm:$0xff]
      %v1177 = vld [vmem:[#allocation2 + $0xc8] sm:$0xff]
      %v1178 = vld [vmem:[#allocation2 + $0xd0] sm:$0xff]
      %v1179 = vld [vmem:[#allocation2 + $0xd8] sm:$0xff]
      %v1180 = vld [vmem:[#allocation2 + $0xe0] sm:$0xff]
      %v1181 = vld [vmem:[#allocation2 + $0xe8] sm:$0xff]
      %v1182 = vld [vmem:[#allocation2 + $0xf0] sm:$0xff]
      %v1183 = vld [vmem:[#allocation2 + $0xf8] sm:$0xff]
      %1185 = vset.pattern.permute.xlu0 0
      %1186 = vperm.xlu0 %1185, %v1057
      %v1187 = vpop.permute.xlu0 %1186
      %1190 = vset.pattern.permute.xlu0 0
      %1191 = vperm.xlu0 %1190, %v1059
      %v1192 = vpop.permute.xlu0 %1191
      %1195 = vset.pattern.permute.xlu0 0
      %1196 = vperm.xlu0 %1195, %v1061
      %v1197 = vpop.permute.xlu0 %1196
      %1200 = vset.pattern.permute.xlu0 0
      %1201 = vperm.xlu0 %1200, %v1063
      %v1202 = vpop.permute.xlu0 %1201
      %1205 = vset.pattern.permute.xlu0 0
      %1206 = vperm.xlu0 %1205, %v1065
      %v1207 = vpop.permute.xlu0 %1206
      %1210 = vset.pattern.permute.xlu0 0
      %1211 = vperm.xlu0 %1210, %v1067
      %v1212 = vpop.permute.xlu0 %1211
      %1215 = vset.pattern.permute.xlu0 0
      %1216 = vperm.xlu0 %1215, %v1069
      %v1217 = vpop.permute.xlu0 %1216
      %1220 = vset.pattern.permute.xlu0 0
      %1221 = vperm.xlu0 %1220, %v1071
      %v1222 = vpop.permute.xlu0 %1221
      %1225 = vset.pattern.permute.xlu0 0
      %1226 = vperm.xlu0 %1225, %v1073
      %v1227 = vpop.permute.xlu0 %1226
      %1230 = vset.pattern.permute.xlu0 0
      %1231 = vperm.xlu0 %1230, %v1075
      %v1232 = vpop.permute.xlu0 %1231
      %1235 = vset.pattern.permute.xlu0 0
      %1236 = vperm.xlu0 %1235, %v1077
      %v1237 = vpop.permute.xlu0 %1236
      %1240 = vset.pattern.permute.xlu0 0
      %1241 = vperm.xlu0 %1240, %v1079
      %v1242 = vpop.permute.xlu0 %1241
      %1245 = vset.pattern.permute.xlu0 0
      %1246 = vperm.xlu0 %1245, %v1081
      %v1247 = vpop.permute.xlu0 %1246
      %1250 = vset.pattern.permute.xlu0 0
      %1251 = vperm.xlu0 %1250, %v1083
      %v1252 = vpop.permute.xlu0 %1251
      %1255 = vset.pattern.permute.xlu0 0
      %1256 = vperm.xlu0 %1255, %v1085
      %v1257 = vpop.permute.xlu0 %1256
      %1260 = vset.pattern.permute.xlu0 0
      %1261 = vperm.xlu0 %1260, %v1087
      %v1262 = vpop.permute.xlu0 %1261
      %1265 = vset.pattern.permute.xlu0 0
      %1266 = vperm.xlu0 %1265, %v1089
      %v1267 = vpop.permute.xlu0 %1266
      %1270 = vset.pattern.permute.xlu0 0
      %1271 = vperm.xlu0 %1270, %v1091
      %v1272 = vpop.permute.xlu0 %1271
      %1275 = vset.pattern.permute.xlu0 0
      %1276 = vperm.xlu0 %1275, %v1093
      %v1277 = vpop.permute.xlu0 %1276
      %1280 = vset.pattern.permute.xlu0 0
      %1281 = vperm.xlu0 %1280, %v1095
      %v1282 = vpop.permute.xlu0 %1281
      %1285 = vset.pattern.permute.xlu0 0
      %1286 = vperm.xlu0 %1285, %v1097
      %v1287 = vpop.permute.xlu0 %1286
      %1290 = vset.pattern.permute.xlu0 0
      %1291 = vperm.xlu0 %1290, %v1099
      %v1292 = vpop.permute.xlu0 %1291
      %1295 = vset.pattern.permute.xlu0 0
      %1296 = vperm.xlu0 %1295, %v1101
      %v1297 = vpop.permute.xlu0 %1296
      %1300 = vset.pattern.permute.xlu0 0
      %1301 = vperm.xlu0 %1300, %v1103
      %v1302 = vpop.permute.xlu0 %1301
      %1305 = vset.pattern.permute.xlu0 0
      %1306 = vperm.xlu0 %1305, %v1105
      %v1307 = vpop.permute.xlu0 %1306
      %1310 = vset.pattern.permute.xlu0 0
      %1311 = vperm.xlu0 %1310, %v1107
      %v1312 = vpop.permute.xlu0 %1311
      %1315 = vset.pattern.permute.xlu0 0
      %1316 = vperm.xlu0 %1315, %v1109
      %v1317 = vpop.permute.xlu0 %1316
      %1320 = vset.pattern.permute.xlu0 0
      %1321 = vperm.xlu0 %1320, %v1111
      %v1322 = vpop.permute.xlu0 %1321
      %1325 = vset.pattern.permute.xlu0 0
      %1326 = vperm.xlu0 %1325, %v1113
      %v1327 = vpop.permute.xlu0 %1326
      %1330 = vset.pattern.permute.xlu0 0
      %1331 = vperm.xlu0 %1330, %v1115
      %v1332 = vpop.permute.xlu0 %1331
      %1335 = vset.pattern.permute.xlu0 0
      %1336 = vperm.xlu0 %1335, %v1117
      %v1337 = vpop.permute.xlu0 %1336
      %1340 = vset.pattern.permute.xlu0 0
      %1341 = vperm.xlu0 %1340, %v1119
      %v1342 = vpop.permute.xlu0 %1341
      %v1344 = vmul.f32 %v1152, %v1187
      %v1345 = vmul.f32 %v1153, %v1192
      %v1346 = vmul.f32 %v1154, %v1197
      %v1347 = vmul.f32 %v1155, %v1202
      %v1348 = vmul.f32 %v1156, %v1207
      %v1349 = vmul.f32 %v1157, %v1212
      %v1350 = vmul.f32 %v1158, %v1217
      %v1351 = vmul.f32 %v1159, %v1222
      %v1352 = vmul.f32 %v1160, %v1227
      %v1353 = vmul.f32 %v1161, %v1232
      %v1354 = vmul.f32 %v1162, %v1237
      %v1355 = vmul.f32 %v1163, %v1242
      %v1356 = vmul.f32 %v1164, %v1247
      %v1357 = vmul.f32 %v1165, %v1252
      %v1358 = vmul.f32 %v1166, %v1257
      %v1359 = vmul.f32 %v1167, %v1262
      %v1360 = vmul.f32 %v1168, %v1267
      %v1361 = vmul.f32 %v1169, %v1272
      %v1362 = vmul.f32 %v1170, %v1277
      %v1363 = vmul.f32 %v1171, %v1282
      %v1364 = vmul.f32 %v1172, %v1287
      %v1365 = vmul.f32 %v1173, %v1292
      %v1366 = vmul.f32 %v1174, %v1297
      %v1367 = vmul.f32 %v1175, %v1302
      %v1368 = vmul.f32 %v1176, %v1307
      %v1369 = vmul.f32 %v1177, %v1312
      %v1370 = vmul.f32 %v1178, %v1317
      %v1371 = vmul.f32 %v1179, %v1322
      %v1372 = vmul.f32 %v1180, %v1327
      %v1373 = vmul.f32 %v1181, %v1332
      %v1374 = vmul.f32 %v1182, %v1337
      %v1375 = vmul.f32 %v1183, %v1342
      %s1376 = smul.u32 0, 256
      %s1377 = sshra.s32 %s1376, 3
      %s1378 = sand.u32 %s1376, 7
      %s1379 = smul.addr %s1377, 4
      %s1380 = scalar_lea.vmem [#allocation7], %s1379
      %v1381 = vld [vmem:[%s1380] sm:$0xf]
      %v1382 = vld [vmem:[%s1380 + $0x4] sm:$0xf]
      %v1383 = vld [vmem:[%s1380 + $0x8] sm:$0xf]
      %v1384 = vld [vmem:[%s1380 + $0xc] sm:$0xf]
      %v1385 = vld [vmem:[%s1380 + $0x10] sm:$0xf]
      %v1386 = vld [vmem:[%s1380 + $0x14] sm:$0xf]
      %v1387 = vld [vmem:[%s1380 + $0x18] sm:$0xf]
      %v1388 = vld [vmem:[%s1380 + $0x1c] sm:$0xf]
      %v1389 = vld [vmem:[%s1380 + $0x20] sm:$0xf]
      %v1390 = vld [vmem:[%s1380 + $0x24] sm:$0xf]
      %v1391 = vld [vmem:[%s1380 + $0x28] sm:$0xf]
      %v1392 = vld [vmem:[%s1380 + $0x2c] sm:$0xf]
      %v1393 = vld [vmem:[%s1380 + $0x30] sm:$0xf]
      %v1394 = vld [vmem:[%s1380 + $0x34] sm:$0xf]
      %v1395 = vld [vmem:[%s1380 + $0x38] sm:$0xf]
      %v1396 = vld [vmem:[%s1380 + $0x3c] sm:$0xf]
      %v1397 = vld [vmem:[%s1380 + $0x40] sm:$0xf]
      %v1398 = vld [vmem:[%s1380 + $0x44] sm:$0xf]
      %v1399 = vld [vmem:[%s1380 + $0x48] sm:$0xf]
      %v1400 = vld [vmem:[%s1380 + $0x4c] sm:$0xf]
      %v1401 = vld [vmem:[%s1380 + $0x50] sm:$0xf]
      %v1402 = vld [vmem:[%s1380 + $0x54] sm:$0xf]
      %v1403 = vld [vmem:[%s1380 + $0x58] sm:$0xf]
      %v1404 = vld [vmem:[%s1380 + $0x5c] sm:$0xf]
      %v1405 = vld [vmem:[%s1380 + $0x60] sm:$0xf]
      %v1406 = vld [vmem:[%s1380 + $0x64] sm:$0xf]
      %v1407 = vld [vmem:[%s1380 + $0x68] sm:$0xf]
      %v1408 = vld [vmem:[%s1380 + $0x6c] sm:$0xf]
      %v1409 = vld [vmem:[%s1380 + $0x70] sm:$0xf]
      %v1410 = vld [vmem:[%s1380 + $0x74] sm:$0xf]
      %v1411 = vld [vmem:[%s1380 + $0x78] sm:$0xf]
      %v1412 = vld [vmem:[%s1380 + $0x7c] sm:$0xf]
      %v1413 = vunpack.c.l.bf16 %v1381
      %v1414 = vunpack.c.l.bf16 %v1382
      %v1415 = vunpack.c.l.bf16 %v1383
      %v1416 = vunpack.c.l.bf16 %v1384
      %v1417 = vunpack.c.l.bf16 %v1385
      %v1418 = vunpack.c.l.bf16 %v1386
      %v1419 = vunpack.c.l.bf16 %v1387
      %v1420 = vunpack.c.l.bf16 %v1388
      %v1421 = vunpack.c.l.bf16 %v1389
      %v1422 = vunpack.c.l.bf16 %v1390
      %v1423 = vunpack.c.l.bf16 %v1391
      %v1424 = vunpack.c.l.bf16 %v1392
      %v1425 = vunpack.c.l.bf16 %v1393
      %v1426 = vunpack.c.l.bf16 %v1394
      %v1427 = vunpack.c.l.bf16 %v1395
      %v1428 = vunpack.c.l.bf16 %v1396
      %v1429 = vunpack.c.l.bf16 %v1397
      %v1430 = vunpack.c.l.bf16 %v1398
      %v1431 = vunpack.c.l.bf16 %v1399
      %v1432 = vunpack.c.l.bf16 %v1400
      %v1433 = vunpack.c.l.bf16 %v1401
      %v1434 = vunpack.c.l.bf16 %v1402
      %v1435 = vunpack.c.l.bf16 %v1403
      %v1436 = vunpack.c.l.bf16 %v1404
      %v1437 = vunpack.c.l.bf16 %v1405
      %v1438 = vunpack.c.l.bf16 %v1406
      %v1439 = vunpack.c.l.bf16 %v1407
      %v1440 = vunpack.c.l.bf16 %v1408
      %v1441 = vunpack.c.l.bf16 %v1409
      %v1442 = vunpack.c.l.bf16 %v1410
      %v1443 = vunpack.c.l.bf16 %v1411
      %v1444 = vunpack.c.l.bf16 %v1412
      %v1445 = vld [vmem:[#allocation9] sm:$0xff]
      %v1446 = vld [vmem:[#allocation9 + $0x8] sm:$0xff]
      %v1447 = vld [vmem:[#allocation9 + $0x10] sm:$0xff]
      %v1448 = vld [vmem:[#allocation9 + $0x18] sm:$0xff]
      %v1449 = vld [vmem:[#allocation9 + $0x20] sm:$0xff]
      %v1450 = vld [vmem:[#allocation9 + $0x28] sm:$0xff]
      %v1451 = vld [vmem:[#allocation9 + $0x30] sm:$0xff]
      %v1452 = vld [vmem:[#allocation9 + $0x38] sm:$0xff]
      %v1453 = vld [vmem:[#allocation9 + $0x40] sm:$0xff]
      %v1454 = vld [vmem:[#allocation9 + $0x48] sm:$0xff]
      %v1455 = vld [vmem:[#allocation9 + $0x50] sm:$0xff]
      %v1456 = vld [vmem:[#allocation9 + $0x58] sm:$0xff]
      %v1457 = vld [vmem:[#allocation9 + $0x60] sm:$0xff]
      %v1458 = vld [vmem:[#allocation9 + $0x68] sm:$0xff]
      %v1459 = vld [vmem:[#allocation9 + $0x70] sm:$0xff]
      %v1460 = vld [vmem:[#allocation9 + $0x78] sm:$0xff]
      %v1461 = vld [vmem:[#allocation9 + $0x80] sm:$0xff]
      %v1462 = vld [vmem:[#allocation9 + $0x88] sm:$0xff]
      %v1463 = vld [vmem:[#allocation9 + $0x90] sm:$0xff]
      %v1464 = vld [vmem:[#allocation9 + $0x98] sm:$0xff]
      %v1465 = vld [vmem:[#allocation9 + $0xa0] sm:$0xff]
      %v1466 = vld [vmem:[#allocation9 + $0xa8] sm:$0xff]
      %v1467 = vld [vmem:[#allocation9 + $0xb0] sm:$0xff]
      %v1468 = vld [vmem:[#allocation9 + $0xb8] sm:$0xff]
      %v1469 = vld [vmem:[#allocation9 + $0xc0] sm:$0xff]
      %v1470 = vld [vmem:[#allocation9 + $0xc8] sm:$0xff]
      %v1471 = vld [vmem:[#allocation9 + $0xd0] sm:$0xff]
      %v1472 = vld [vmem:[#allocation9 + $0xd8] sm:$0xff]
      %v1473 = vld [vmem:[#allocation9 + $0xe0] sm:$0xff]
      %v1474 = vld [vmem:[#allocation9 + $0xe8] sm:$0xff]
      %v1475 = vld [vmem:[#allocation9 + $0xf0] sm:$0xff]
      %v1476 = vld [vmem:[#allocation9 + $0xf8] sm:$0xff]
      %v1477 = vld [vmem:[%s3] sm:$0x1]
      %v1479 = vlaneseq
      %v1480 = vshrl.u32 %v1479, 7
      %v1481 = vsub.s32 0, %v1480
      %v1482 = vrot.slane %v1477, %v1481
      %1484 = vmatprep.subr.mxu0 0.0
      %1485 = vmatpush1.msra.mxu0 %v1445
      %1486 = vmatprep.subr.mxu0 0.0
      %1487 = vmatpush1.msra.mxu0 %v1446
      %1488 = vmatprep.subr.mxu0 0.0
      %1489 = vmatpush1.msra.mxu0 %v1447
      %1490 = vmatprep.subr.mxu0 0.0
      %1491 = vmatpush1.msra.mxu0 %v1448
      %1492 = vmatprep.subr.mxu0 0.0
      %1493 = vmatpush1.msra.mxu0 %v1449
      %1494 = vmatprep.subr.mxu0 0.0
      %1495 = vmatpush1.msra.mxu0 %v1450
      %1496 = vmatprep.subr.mxu0 0.0
      %1497 = vmatpush1.msra.mxu0 %v1451
      %1498 = vmatprep.subr.mxu0 0.0
      %1499 = vmatpush1.msra.mxu0 %v1452
      %1500 = vmatprep.subr.mxu0 0.0
      %1501 = vmatpush1.msra.mxu0 %v1453
      %1502 = vmatprep.subr.mxu0 0.0
      %1503 = vmatpush1.msra.mxu0 %v1454
      %1504 = vmatprep.subr.mxu0 0.0
      %1505 = vmatpush1.msra.mxu0 %v1455
      %1506 = vmatprep.subr.mxu0 0.0
      %1507 = vmatpush1.msra.mxu0 %v1456
      %1508 = vmatprep.subr.mxu0 0.0
      %1509 = vmatpush1.msra.mxu0 %v1457
      %1510 = vmatprep.subr.mxu0 0.0
      %1511 = vmatpush1.msra.mxu0 %v1458
      %1512 = vmatprep.subr.mxu0 0.0
      %1513 = vmatpush1.msra.mxu0 %v1459
      %1514 = vmatprep.subr.mxu0 0.0
      %1515 = vmatpush1.msra.mxu0 %v1460
      %1516 = vmatprep.subr.mxu0 0.0
      %1517 = vmatpush1.msra.mxu0 %v1461
      %1518 = vmatprep.subr.mxu0 0.0
      %1519 = vmatpush1.msra.mxu0 %v1462
      %1520 = vmatprep.subr.mxu0 0.0
      %1521 = vmatpush1.msra.mxu0 %v1463
      %1522 = vmatprep.subr.mxu0 0.0
      %1523 = vmatpush1.msra.mxu0 %v1464
      %1524 = vmatprep.subr.mxu0 0.0
      %1525 = vmatpush1.msra.mxu0 %v1465
      %1526 = vmatprep.subr.mxu0 0.0
      %1527 = vmatpush1.msra.mxu0 %v1466
      %1528 = vmatprep.subr.mxu0 0.0
      %1529 = vmatpush1.msra.mxu0 %v1467
      %1530 = vmatprep.subr.mxu0 0.0
      %1531 = vmatpush1.msra.mxu0 %v1468
      %1532 = vmatprep.subr.mxu0 0.0
      %1533 = vmatpush1.msra.mxu0 %v1469
      %1534 = vmatprep.subr.mxu0 0.0
      %1535 = vmatpush1.msra.mxu0 %v1470
      %1536 = vmatprep.subr.mxu0 0.0
      %1537 = vmatpush1.msra.mxu0 %v1471
      %1538 = vmatprep.subr.mxu0 0.0
      %1539 = vmatpush1.msra.mxu0 %v1472
      %1540 = vmatprep.subr.mxu0 0.0
      %1541 = vmatpush1.msra.mxu0 %v1473
      %1542 = vmatprep.subr.mxu0 0.0
      %1543 = vmatpush1.msra.mxu0 %v1474
      %1544 = vmatprep.subr.mxu0 0.0
      %1545 = vmatpush1.msra.mxu0 %v1475
      %1546 = vmatprep.subr.mxu0 0.0
      %1547 = vmatpush1.msra.mxu0 %v1476
      %1548 = vmatprep.mubr.f32.mxu0 %v1413
      %1549 = vmatmul.mubr.f32.gmra.mrb[0].mxu0 %v1344
      %v1550 = vpop.f32.mrb[0].mxu0
      %v1551 = vadd.f32 %v1482, %v1550
      %v1552 = vpop.f32.mrb[0].mxu0
      %1553 = vmatprep.mubr.f32.mxu0 %v1414
      %1554 = vmatmul.mubr.f32.gmra.mrb[0].mxu0 %v1345
      %v1555 = vpop.f32.mrb[0].mxu0
      %v1556 = vadd.f32 %v1482, %v1555
      %v1557 = vpop.f32.mrb[0].mxu0
      %1558 = vmatprep.mubr.f32.mxu0 %v1415
      %1559 = vmatmul.mubr.f32.gmra.mrb[0].mxu0 %v1346
      %v1560 = vpop.f32.mrb[0].mxu0
      %v1561 = vadd.f32 %v1482, %v1560
      %v1562 = vpop.f32.mrb[0].mxu0
      %1563 = vmatprep.mubr.f32.mxu0 %v1416
      %1564 = vmatmul.mubr.f32.gmra.mrb[0].mxu0 %v1347
      %v1565 = vpop.f32.mrb[0].mxu0
      %v1566 = vadd.f32 %v1482, %v1565
      %v1567 = vpop.f32.mrb[0].mxu0
      %1568 = vmatprep.mubr.f32.mxu0 %v1417
      %1569 = vmatmul.mubr.f32.gmra.mrb[0].mxu0 %v1348
      %v1570 = vpop.f32.mrb[0].mxu0
      %v1571 = vadd.f32 %v1482, %v1570
      %v1572 = vpop.f32.mrb[0].mxu0
      %1573 = vmatprep.mubr.f32.mxu0 %v1418
      %1574 = vmatmul.mubr.f32.gmra.mrb[0].mxu0 %v1349
      %v1575 = vpop.f32.mrb[0].mxu0
      %v1576 = vadd.f32 %v1482, %v1575
      %v1577 = vpop.f32.mrb[0].mxu0
      %1578 = vmatprep.mubr.f32.mxu0 %v1419
      %1579 = vmatmul.mubr.f32.gmra.mrb[0].mxu0 %v1350
      %v1580 = vpop.f32.mrb[0].mxu0
      %v1581 = vadd.f32 %v1482, %v1580
      %v1582 = vpop.f32.mrb[0].mxu0
      %1583 = vmatprep.mubr.f32.mxu0 %v1420
      %1584 = vmatmul.mubr.f32.gmra.mrb[0].mxu0 %v1351
      %v1585 = vpop.f32.mrb[0].mxu0
      %v1586 = vadd.f32 %v1482, %v1585
      %v1587 = vpop.f32.mrb[0].mxu0
      %1588 = vmatprep.mubr.f32.mxu0 %v1421
      %1589 = vmatmul.mubr.f32.gmra.mrb[0].mxu0 %v1352
      %v1590 = vpop.f32.mrb[0].mxu0
      %v1591 = vadd.f32 %v1482, %v1590
      %v1592 = vpop.f32.mrb[0].mxu0
      %1593 = vmatprep.mubr.f32.mxu0 %v1422
      %1594 = vmatmul.mubr.f32.gmra.mrb[0].mxu0 %v1353
      %v1595 = vpop.f32.mrb[0].mxu0
      %v1596 = vadd.f32 %v1482, %v1595
      %v1597 = vpop.f32.mrb[0].mxu0
      %1598 = vmatprep.mubr.f32.mxu0 %v1423
      %1599 = vmatmul.mubr.f32.gmra.mrb[0].mxu0 %v1354
      %v1600 = vpop.f32.mrb[0].mxu0
      %v1601 = vadd.f32 %v1482, %v1600
      %v1602 = vpop.f32.mrb[0].mxu0
      %1603 = vmatprep.mubr.f32.mxu0 %v1424
      %1604 = vmatmul.mubr.f32.gmra.mrb[0].mxu0 %v1355
      %v1605 = vpop.f32.mrb[0].mxu0
      %v1606 = vadd.f32 %v1482, %v1605
      %v1607 = vpop.f32.mrb[0].mxu0
      %1608 = vmatprep.mubr.f32.mxu0 %v1425
      %1609 = vmatmul.mubr.f32.gmra.mrb[0].mxu0 %v1356
      %v1610 = vpop.f32.mrb[0].mxu0
      %v1611 = vadd.f32 %v1482, %v1610
      %v1612 = vpop.f32.mrb[0].mxu0
      %1613 = vmatprep.mubr.f32.mxu0 %v1426
      %1614 = vmatmul.mubr.f32.gmra.mrb[0].mxu0 %v1357
      %v1615 = vpop.f32.mrb[0].mxu0
      %v1616 = vadd.f32 %v1482, %v1615
      %v1617 = vpop.f32.mrb[0].mxu0
      %1618 = vmatprep.mubr.f32.mxu0 %v1427
      %1619 = vmatmul.mubr.f32.gmra.mrb[0].mxu0 %v1358
      %v1620 = vpop.f32.mrb[0].mxu0
      %v1621 = vadd.f32 %v1482, %v1620
      %v1622 = vpop.f32.mrb[0].mxu0
      %1623 = vmatprep.mubr.f32.mxu0 %v1428
      %1624 = vmatmul.mubr.f32.gmra.mrb[0].mxu0 %v1359
      %v1625 = vpop.f32.mrb[0].mxu0
      %v1626 = vadd.f32 %v1482, %v1625
      %v1627 = vpop.f32.mrb[0].mxu0
      %1628 = vmatprep.mubr.f32.mxu0 %v1429
      %1629 = vmatmul.mubr.f32.gmra.mrb[0].mxu0 %v1360
      %v1630 = vpop.f32.mrb[0].mxu0
      %v1631 = vadd.f32 %v1482, %v1630
      %v1632 = vpop.f32.mrb[0].mxu0
      %1633 = vmatprep.mubr.f32.mxu0 %v1430
      %1634 = vmatmul.mubr.f32.gmra.mrb[0].mxu0 %v1361
      %v1635 = vpop.f32.mrb[0].mxu0
      %v1636 = vadd.f32 %v1482, %v1635
      %v1637 = vpop.f32.mrb[0].mxu0
      %1638 = vmatprep.mubr.f32.mxu0 %v1431
      %1639 = vmatmul.mubr.f32.gmra.mrb[0].mxu0 %v1362
      %v1640 = vpop.f32.mrb[0].mxu0
      %v1641 = vadd.f32 %v1482, %v1640
      %v1642 = vpop.f32.mrb[0].mxu0
      %1643 = vmatprep.mubr.f32.mxu0 %v1432
      %1644 = vmatmul.mubr.f32.gmra.mrb[0].mxu0 %v1363
      %v1645 = vpop.f32.mrb[0].mxu0
      %v1646 = vadd.f32 %v1482, %v1645
      %v1647 = vpop.f32.mrb[0].mxu0
      %1648 = vmatprep.mubr.f32.mxu0 %v1433
      %1649 = vmatmul.mubr.f32.gmra.mrb[0].mxu0 %v1364
      %v1650 = vpop.f32.mrb[0].mxu0
      %v1651 = vadd.f32 %v1482, %v1650
      %v1652 = vpop.f32.mrb[0].mxu0
      %1653 = vmatprep.mubr.f32.mxu0 %v1434
      %1654 = vmatmul.mubr.f32.gmra.mrb[0].mxu0 %v1365
      %v1655 = vpop.f32.mrb[0].mxu0
      %v1656 = vadd.f32 %v1482, %v1655
      %v1657 = vpop.f32.mrb[0].mxu0
      %1658 = vmatprep.mubr.f32.mxu0 %v1435
      %1659 = vmatmul.mubr.f32.gmra.mrb[0].mxu0 %v1366
      %v1660 = vpop.f32.mrb[0].mxu0
      %v1661 = vadd.f32 %v1482, %v1660
      %v1662 = vpop.f32.mrb[0].mxu0
      %1663 = vmatprep.mubr.f32.mxu0 %v1436
      %1664 = vmatmul.mubr.f32.gmra.mrb[0].mxu0 %v1367
      %v1665 = vpop.f32.mrb[0].mxu0
      %v1666 = vadd.f32 %v1482, %v1665
      %v1667 = vpop.f32.mrb[0].mxu0
      %1668 = vmatprep.mubr.f32.mxu0 %v1437
      %1669 = vmatmul.mubr.f32.gmra.mrb[0].mxu0 %v1368
      %v1670 = vpop.f32.mrb[0].mxu0
      %v1671 = vadd.f32 %v1482, %v1670
      %v1672 = vpop.f32.mrb[0].mxu0
      %1673 = vmatprep.mubr.f32.mxu0 %v1438
      %1674 = vmatmul.mubr.f32.gmra.mrb[0].mxu0 %v1369
      %v1675 = vpop.f32.mrb[0].mxu0
      %v1676 = vadd.f32 %v1482, %v1675
      %v1677 = vpop.f32.mrb[0].mxu0
      %1678 = vmatprep.mubr.f32.mxu0 %v1439
      %1679 = vmatmul.mubr.f32.gmra.mrb[0].mxu0 %v1370
      %v1680 = vpop.f32.mrb[0].mxu0
      %v1681 = vadd.f32 %v1482, %v1680
      %v1682 = vpop.f32.mrb[0].mxu0
      %1683 = vmatprep.mubr.f32.mxu0 %v1440
      %1684 = vmatmul.mubr.f32.gmra.mrb[0].mxu0 %v1371
      %v1685 = vpop.f32.mrb[0].mxu0
      %v1686 = vadd.f32 %v1482, %v1685
      %v1687 = vpop.f32.mrb[0].mxu0
      %1688 = vmatprep.mubr.f32.mxu0 %v1441
      %1689 = vmatmul.mubr.f32.gmra.mrb[0].mxu0 %v1372
      %v1690 = vpop.f32.mrb[0].mxu0
      %v1691 = vadd.f32 %v1482, %v1690
      %v1692 = vpop.f32.mrb[0].mxu0
      %1693 = vmatprep.mubr.f32.mxu0 %v1442
      %1694 = vmatmul.mubr.f32.gmra.mrb[0].mxu0 %v1373
      %v1695 = vpop.f32.mrb[0].mxu0
      %v1696 = vadd.f32 %v1482, %v1695
      %v1697 = vpop.f32.mrb[0].mxu0
      %1698 = vmatprep.mubr.f32.mxu0 %v1443
      %1699 = vmatmul.mubr.f32.gmra.mrb[0].mxu0 %v1374
      %v1700 = vpop.f32.mrb[0].mxu0
      %v1701 = vadd.f32 %v1482, %v1700
      %v1702 = vpop.f32.mrb[0].mxu0
      %1703 = vmatprep.mubr.f32.mxu0 %v1444
      %1704 = vmatmul.mubr.f32.gmra.mrb[0].mxu0 %v1375
      %v1705 = vpop.f32.mrb[0].mxu0
      %v1706 = vadd.f32 %v1482, %v1705
      %v1707 = vpop.f32.mrb[0].mxu0
      %1708 = vdwg.mxu0
      %v1709 = vmax.f32 %v1551, 0.0
      %v1710 = vmax.f32 %v1556, 0.0
      %v1711 = vmax.f32 %v1561, 0.0
      %v1712 = vmax.f32 %v1566, 0.0
      %v1713 = vmax.f32 %v1571, 0.0
      %v1714 = vmax.f32 %v1576, 0.0
      %v1715 = vmax.f32 %v1581, 0.0
      %v1716 = vmax.f32 %v1586, 0.0
      %v1717 = vmax.f32 %v1591, 0.0
      %v1718 = vmax.f32 %v1596, 0.0
      %v1719 = vmax.f32 %v1601, 0.0
      %v1720 = vmax.f32 %v1606, 0.0
      %v1721 = vmax.f32 %v1611, 0.0
      %v1722 = vmax.f32 %v1616, 0.0
      %v1723 = vmax.f32 %v1621, 0.0
      %v1724 = vmax.f32 %v1626, 0.0
      %v1725 = vmax.f32 %v1631, 0.0
      %v1726 = vmax.f32 %v1636, 0.0
      %v1727 = vmax.f32 %v1641, 0.0
      %v1728 = vmax.f32 %v1646, 0.0
      %v1729 = vmax.f32 %v1651, 0.0
      %v1730 = vmax.f32 %v1656, 0.0
      %v1731 = vmax.f32 %v1661, 0.0
      %v1732 = vmax.f32 %v1666, 0.0
      %v1733 = vmax.f32 %v1671, 0.0
      %v1734 = vmax.f32 %v1676, 0.0
      %v1735 = vmax.f32 %v1681, 0.0
      %v1736 = vmax.f32 %v1686, 0.0
      %v1737 = vmax.f32 %v1691, 0.0
      %v1738 = vmax.f32 %v1696, 0.0
      %v1739 = vmax.f32 %v1701, 0.0
      %v1740 = vmax.f32 %v1706, 0.0
      %1741 = vst [vmem:[#allocation12] sm:$0xff] %v1709
      %1742 = vst [vmem:[#allocation12 + $0x8] sm:$0xff] %v1710
      %1743 = vst [vmem:[#allocation12 + $0x10] sm:$0xff] %v1711
      %1744 = vst [vmem:[#allocation12 + $0x18] sm:$0xff] %v1712
      %1745 = vst [vmem:[#allocation12 + $0x20] sm:$0xff] %v1713
      %1746 = vst [vmem:[#allocation12 + $0x28] sm:$0xff] %v1714
      %1747 = vst [vmem:[#allocation12 + $0x30] sm:$0xff] %v1715
      %1748 = vst [vmem:[#allocation12 + $0x38] sm:$0xff] %v1716
      %1749 = vst [vmem:[#allocation12 + $0x40] sm:$0xff] %v1717
      %1750 = vst [vmem:[#allocation12 + $0x48] sm:$0xff] %v1718
      %1751 = vst [vmem:[#allocation12 + $0x50] sm:$0xff] %v1719
      %1752 = vst [vmem:[#allocation12 + $0x58] sm:$0xff] %v1720
      %1753 = vst [vmem:[#allocation12 + $0x60] sm:$0xff] %v1721
      %1754 = vst [vmem:[#allocation12 + $0x68] sm:$0xff] %v1722
      %1755 = vst [vmem:[#allocation12 + $0x70] sm:$0xff] %v1723
      %1756 = vst [vmem:[#allocation12 + $0x78] sm:$0xff] %v1724
      %1757 = vst [vmem:[#allocation12 + $0x80] sm:$0xff] %v1725
      %1758 = vst [vmem:[#allocation12 + $0x88] sm:$0xff] %v1726
      %1759 = vst [vmem:[#allocation12 + $0x90] sm:$0xff] %v1727
      %1760 = vst [vmem:[#allocation12 + $0x98] sm:$0xff] %v1728
      %1761 = vst [vmem:[#allocation12 + $0xa0] sm:$0xff] %v1729
      %1762 = vst [vmem:[#allocation12 + $0xa8] sm:$0xff] %v1730
      %1763 = vst [vmem:[#allocation12 + $0xb0] sm:$0xff] %v1731
      %1764 = vst [vmem:[#allocation12 + $0xb8] sm:$0xff] %v1732
      %1765 = vst [vmem:[#allocation12 + $0xc0] sm:$0xff] %v1733
      %1766 = vst [vmem:[#allocation12 + $0xc8] sm:$0xff] %v1734
      %1767 = vst [vmem:[#allocation12 + $0xd0] sm:$0xff] %v1735
      %1768 = vst [vmem:[#allocation12 + $0xd8] sm:$0xff] %v1736
      %1769 = vst [vmem:[#allocation12 + $0xe0] sm:$0xff] %v1737
      %1770 = vst [vmem:[#allocation12 + $0xe8] sm:$0xff] %v1738
      %1771 = vst [vmem:[#allocation12 + $0xf0] sm:$0xff] %v1739
      %1772 = vst [vmem:[#allocation12 + $0xf8] sm:$0xff] %v1740
      %v1773 = vld [vmem:[#allocation10] sm:$0xff]
      %v1774 = vld [vmem:[#allocation10 + $0x8] sm:$0xff]
      %v1775 = vld [vmem:[#allocation10 + $0x10] sm:$0xff]
      %v1776 = vld [vmem:[#allocation10 + $0x18] sm:$0xff]
      %v1777 = vld [vmem:[#allocation10 + $0x20] sm:$0xff]
      %v1778 = vld [vmem:[#allocation10 + $0x28] sm:$0xff]
      %v1779 = vld [vmem:[#allocation10 + $0x30] sm:$0xff]
      %v1780 = vld [vmem:[#allocation10 + $0x38] sm:$0xff]
      %v1781 = vld [vmem:[#allocation10 + $0x40] sm:$0xff]
      %v1782 = vld [vmem:[#allocation10 + $0x48] sm:$0xff]
      %v1783 = vld [vmem:[#allocation10 + $0x50] sm:$0xff]
      %v1784 = vld [vmem:[#allocation10 + $0x58] sm:$0xff]
      %v1785 = vld [vmem:[#allocation10 + $0x60] sm:$0xff]
      %v1786 = vld [vmem:[#allocation10 + $0x68] sm:$0xff]
      %v1787 = vld [vmem:[#allocation10 + $0x70] sm:$0xff]
      %v1788 = vld [vmem:[#allocation10 + $0x78] sm:$0xff]
      %1789 = vmatprep.subr.mxu0 0.0
      %1790 = vmatpush1.msra.mxu0 %v1773
      %1791 = vmatprep.subr.mxu0 0.0
      %1792 = vmatpush1.msra.mxu0 %v1774
      %1793 = vmatprep.subr.mxu0 0.0
      %1794 = vmatpush1.msra.mxu0 %v1775
      %1795 = vmatprep.subr.mxu0 0.0
      %1796 = vmatpush1.msra.mxu0 %v1776
      %1797 = vmatprep.subr.mxu0 0.0
      %1798 = vmatpush1.msra.mxu0 %v1777
      %1799 = vmatprep.subr.mxu0 0.0
      %1800 = vmatpush1.msra.mxu0 %v1778
      %1801 = vmatprep.subr.mxu0 0.0
      %1802 = vmatpush1.msra.mxu0 %v1779
      %1803 = vmatprep.subr.mxu0 0.0
      %1804 = vmatpush1.msra.mxu0 %v1780
      %1805 = vmatprep.subr.mxu0 0.0
      %1806 = vmatpush1.msra.mxu0 %v1781
      %1807 = vmatprep.subr.mxu0 0.0
      %1808 = vmatpush1.msra.mxu0 %v1782
      %1809 = vmatprep.subr.mxu0 0.0
      %1810 = vmatpush1.msra.mxu0 %v1783
      %1811 = vmatprep.subr.mxu0 0.0
      %1812 = vmatpush1.msra.mxu0 %v1784
      %1813 = vmatprep.subr.mxu0 0.0
      %1814 = vmatpush1.msra.mxu0 %v1785
      %1815 = vmatprep.subr.mxu0 0.0
      %1816 = vmatpush1.msra.mxu0 %v1786
      %1817 = vmatprep.subr.mxu0 0.0
      %1818 = vmatpush1.msra.mxu0 %v1787
      %1819 = vmatprep.subr.mxu0 0.0
      %1820 = vmatpush1.msra.mxu0 %v1788
      %1821 = vmatprep.subr.mxu0 0.0
      %1822 = vmatpush1.msra.mxu0 0.0
      %1823 = vmatprep.subr.mxu0 0.0
      %1824 = vmatpush1.msra.mxu0 0.0
      %1825 = vmatprep.subr.mxu0 0.0
      %1826 = vmatpush1.msra.mxu0 0.0
      %1827 = vmatprep.subr.mxu0 0.0
      %1828 = vmatpush1.msra.mxu0 0.0
      %1829 = vmatprep.subr.mxu0 0.0
      %1830 = vmatpush1.msra.mxu0 0.0
      %1831 = vmatprep.subr.mxu0 0.0
      %1832 = vmatpush1.msra.mxu0 0.0
      %1833 = vmatprep.subr.mxu0 0.0
      %1834 = vmatpush1.msra.mxu0 0.0
      %1835 = vmatprep.subr.mxu0 0.0
      %1836 = vmatpush1.msra.mxu0 0.0
      %1837 = vmatprep.subr.mxu0 0.0
      %1838 = vmatpush1.msra.mxu0 0.0
      %1839 = vmatprep.subr.mxu0 0.0
      %1840 = vmatpush1.msra.mxu0 0.0
      %1841 = vmatprep.subr.mxu0 0.0
      %1842 = vmatpush1.msra.mxu0 0.0
      %1843 = vmatprep.subr.mxu0 0.0
      %1844 = vmatpush1.msra.mxu0 0.0
      %1845 = vmatprep.subr.mxu0 0.0
      %1846 = vmatpush1.msra.mxu0 0.0
      %1847 = vmatprep.subr.mxu0 0.0
      %1848 = vmatpush1.msra.mxu0 0.0
      %1849 = vmatprep.subr.mxu0 0.0
      %1850 = vmatpush1.msra.mxu0 0.0
      %1851 = vmatprep.subr.mxu0 0.0
      %1852 = vmatpush1.msra.mxu0 0.0
      %1853 = vmatprep.mubr.f32.mxu0 0.0
      %1854 = vmatmul.mubr.f32.gmra.mrb[0].mxu0 %v1709
      %v1855 = vpop.f32.mrb[0].mxu0
      %v1856 = vadd.f32 0.0, %v1855
      %v1857 = vpop.f32.mrb[0].mxu0
      %1858 = vmatprep.mubr.f32.mxu0 0.0
      %1859 = vmatmul.mubr.f32.gmra.mrb[0].mxu0 %v1710
      %v1860 = vpop.f32.mrb[0].mxu0
      %v1861 = vadd.f32 0.0, %v1860
      %v1862 = vpop.f32.mrb[0].mxu0
      %1863 = vmatprep.mubr.f32.mxu0 0.0
      %1864 = vmatmul.mubr.f32.gmra.mrb[0].mxu0 %v1711
      %v1865 = vpop.f32.mrb[0].mxu0
      %v1866 = vadd.f32 0.0, %v1865
      %v1867 = vpop.f32.mrb[0].mxu0
      %1868 = vmatprep.mubr.f32.mxu0 0.0
      %1869 = vmatmul.mubr.f32.gmra.mrb[0].mxu0 %v1712
      %v1870 = vpop.f32.mrb[0].mxu0
      %v1871 = vadd.f32 0.0, %v1870
      %v1872 = vpop.f32.mrb[0].mxu0
      %1873 = vmatprep.mubr.f32.mxu0 0.0
      %1874 = vmatmul.mubr.f32.gmra.mrb[0].mxu0 %v1713
      %v1875 = vpop.f32.mrb[0].mxu0
      %v1876 = vadd.f32 0.0, %v1875
      %v1877 = vpop.f32.mrb[0].mxu0
      %1878 = vmatprep.mubr.f32.mxu0 0.0
      %1879 = vmatmul.mubr.f32.gmra.mrb[0].mxu0 %v1714
      %v1880 = vpop.f32.mrb[0].mxu0
      %v1881 = vadd.f32 0.0, %v1880
      %v1882 = vpop.f32.mrb[0].mxu0
      %1883 = vmatprep.mubr.f32.mxu0 0.0
      %1884 = vmatmul.mubr.f32.gmra.mrb[0].mxu0 %v1715
      %v1885 = vpop.f32.mrb[0].mxu0
      %v1886 = vadd.f32 0.0, %v1885
      %v1887 = vpop.f32.mrb[0].mxu0
      %1888 = vmatprep.mubr.f32.mxu0 0.0
      %1889 = vmatmul.mubr.f32.gmra.mrb[0].mxu0 %v1716
      %v1890 = vpop.f32.mrb[0].mxu0
      %v1891 = vadd.f32 0.0, %v1890
      %v1892 = vpop.f32.mrb[0].mxu0
      %1893 = vmatprep.mubr.f32.mxu0 0.0
      %1894 = vmatmul.mubr.f32.gmra.mrb[0].mxu0 %v1717
      %v1895 = vpop.f32.mrb[0].mxu0
      %v1896 = vadd.f32 0.0, %v1895
      %v1897 = vpop.f32.mrb[0].mxu0
      %1898 = vmatprep.mubr.f32.mxu0 0.0
      %1899 = vmatmul.mubr.f32.gmra.mrb[0].mxu0 %v1718
      %v1900 = vpop.f32.mrb[0].mxu0
      %v1901 = vadd.f32 0.0, %v1900
      %v1902 = vpop.f32.mrb[0].mxu0
      %1903 = vmatprep.mubr.f32.mxu0 0.0
      %1904 = vmatmul.mubr.f32.gmra.mrb[0].mxu0 %v1719
      %v1905 = vpop.f32.mrb[0].mxu0
      %v1906 = vadd.f32 0.0, %v1905
      %v1907 = vpop.f32.mrb[0].mxu0
      %1908 = vmatprep.mubr.f32.mxu0 0.0
      %1909 = vmatmul.mubr.f32.gmra.mrb[0].mxu0 %v1720
      %v1910 = vpop.f32.mrb[0].mxu0
      %v1911 = vadd.f32 0.0, %v1910
      %v1912 = vpop.f32.mrb[0].mxu0
      %1913 = vmatprep.mubr.f32.mxu0 0.0
      %1914 = vmatmul.mubr.f32.gmra.mrb[0].mxu0 %v1721
      %v1915 = vpop.f32.mrb[0].mxu0
      %v1916 = vadd.f32 0.0, %v1915
      %v1917 = vpop.f32.mrb[0].mxu0
      %1918 = vmatprep.mubr.f32.mxu0 0.0
      %1919 = vmatmul.mubr.f32.gmra.mrb[0].mxu0 %v1722
      %v1920 = vpop.f32.mrb[0].mxu0
      %v1921 = vadd.f32 0.0, %v1920
      %v1922 = vpop.f32.mrb[0].mxu0
      %1923 = vmatprep.mubr.f32.mxu0 0.0
      %1924 = vmatmul.mubr.f32.gmra.mrb[0].mxu0 %v1723
      %v1925 = vpop.f32.mrb[0].mxu0
      %v1926 = vadd.f32 0.0, %v1925
      %v1927 = vpop.f32.mrb[0].mxu0
      %1928 = vmatprep.mubr.f32.mxu0 0.0
      %1929 = vmatmul.mubr.f32.gmra.mrb[0].mxu0 %v1724
      %v1930 = vpop.f32.mrb[0].mxu0
      %v1931 = vadd.f32 0.0, %v1930
      %v1932 = vpop.f32.mrb[0].mxu0
      %1933 = vmatprep.mubr.f32.mxu0 0.0
      %1934 = vmatmul.mubr.f32.gmra.mrb[0].mxu0 %v1725
      %v1935 = vpop.f32.mrb[0].mxu0
      %v1936 = vadd.f32 0.0, %v1935
      %v1937 = vpop.f32.mrb[0].mxu0
      %1938 = vmatprep.mubr.f32.mxu0 0.0
      %1939 = vmatmul.mubr.f32.gmra.mrb[0].mxu0 %v1726
      %v1940 = vpop.f32.mrb[0].mxu0
      %v1941 = vadd.f32 0.0, %v1940
      %v1942 = vpop.f32.mrb[0].mxu0
      %1943 = vmatprep.mubr.f32.mxu0 0.0
      %1944 = vmatmul.mubr.f32.gmra.mrb[0].mxu0 %v1727
      %v1945 = vpop.f32.mrb[0].mxu0
      %v1946 = vadd.f32 0.0, %v1945
      %v1947 = vpop.f32.mrb[0].mxu0
      %1948 = vmatprep.mubr.f32.mxu0 0.0
      %1949 = vmatmul.mubr.f32.gmra.mrb[0].mxu0 %v1728
      %v1950 = vpop.f32.mrb[0].mxu0
      %v1951 = vadd.f32 0.0, %v1950
      %v1952 = vpop.f32.mrb[0].mxu0
      %1953 = vmatprep.mubr.f32.mxu0 0.0
      %1954 = vmatmul.mubr.f32.gmra.mrb[0].mxu0 %v1729
      %v1955 = vpop.f32.mrb[0].mxu0
      %v1956 = vadd.f32 0.0, %v1955
      %v1957 = vpop.f32.mrb[0].mxu0
      %1958 = vmatprep.mubr.f32.mxu0 0.0
      %1959 = vmatmul.mubr.f32.gmra.mrb[0].mxu0 %v1730
      %v1960 = vpop.f32.mrb[0].mxu0
      %v1961 = vadd.f32 0.0, %v1960
      %v1962 = vpop.f32.mrb[0].mxu0
      %1963 = vmatprep.mubr.f32.mxu0 0.0
      %1964 = vmatmul.mubr.f32.gmra.mrb[0].mxu0 %v1731
      %v1965 = vpop.f32.mrb[0].mxu0
      %v1966 = vadd.f32 0.0, %v1965
      %v1967 = vpop.f32.mrb[0].mxu0
      %1968 = vmatprep.mubr.f32.mxu0 0.0
      %1969 = vmatmul.mubr.f32.gmra.mrb[0].mxu0 %v1732
      %v1970 = vpop.f32.mrb[0].mxu0
      %v1971 = vadd.f32 0.0, %v1970
      %v1972 = vpop.f32.mrb[0].mxu0
      %1973 = vmatprep.mubr.f32.mxu0 0.0
      %1974 = vmatmul.mubr.f32.gmra.mrb[0].mxu0 %v1733
      %v1975 = vpop.f32.mrb[0].mxu0
      %v1976 = vadd.f32 0.0, %v1975
      %v1977 = vpop.f32.mrb[0].mxu0
      %1978 = vmatprep.mubr.f32.mxu0 0.0
      %1979 = vmatmul.mubr.f32.gmra.mrb[0].mxu0 %v1734
      %v1980 = vpop.f32.mrb[0].mxu0
      %v1981 = vadd.f32 0.0, %v1980
      %v1982 = vpop.f32.mrb[0].mxu0
      %1983 = vmatprep.mubr.f32.mxu0 0.0
      %1984 = vmatmul.mubr.f32.gmra.mrb[0].mxu0 %v1735
      %v1985 = vpop.f32.mrb[0].mxu0
      %v1986 = vadd.f32 0.0, %v1985
      %v1987 = vpop.f32.mrb[0].mxu0
      %1988 = vmatprep.mubr.f32.mxu0 0.0
      %1989 = vmatmul.mubr.f32.gmra.mrb[0].mxu0 %v1736
      %v1990 = vpop.f32.mrb[0].mxu0
      %v1991 = vadd.f32 0.0, %v1990
      %v1992 = vpop.f32.mrb[0].mxu0
      %1993 = vmatprep.mubr.f32.mxu0 0.0
      %1994 = vmatmul.mubr.f32.gmra.mrb[0].mxu0 %v1737
      %v1995 = vpop.f32.mrb[0].mxu0
      %v1996 = vadd.f32 0.0, %v1995
      %v1997 = vpop.f32.mrb[0].mxu0
      %1998 = vmatprep.mubr.f32.mxu0 0.0
      %1999 = vmatmul.mubr.f32.gmra.mrb[0].mxu0 %v1738
      %v2000 = vpop.f32.mrb[0].mxu0
      %v2001 = vadd.f32 0.0, %v2000
      %v2002 = vpop.f32.mrb[0].mxu0
      %2003 = vmatprep.mubr.f32.mxu0 0.0
      %2004 = vmatmul.mubr.f32.gmra.mrb[0].mxu0 %v1739
      %v2005 = vpop.f32.mrb[0].mxu0
      %v2006 = vadd.f32 0.0, %v2005
      %v2007 = vpop.f32.mrb[0].mxu0
      %2008 = vmatprep.mubr.f32.mxu0 0.0
      %2009 = vmatmul.mubr.f32.gmra.mrb[0].mxu0 %v1740
      %v2010 = vpop.f32.mrb[0].mxu0
      %v2011 = vadd.f32 0.0, %v2010
      %v2012 = vpop.f32.mrb[0].mxu0
      %2013 = vdwg.mxu0
      %v2014 = vpack.c.bf16 %v1861, %v1856
      %v2015 = vpack.c.bf16 %v1871, %v1866
      %v2016 = vpack.c.bf16 %v1881, %v1876
      %v2017 = vpack.c.bf16 %v1891, %v1886
      %v2018 = vpack.c.bf16 %v1901, %v1896
      %v2019 = vpack.c.bf16 %v1911, %v1906
      %v2020 = vpack.c.bf16 %v1921, %v1916
      %v2021 = vpack.c.bf16 %v1931, %v1926
      %v2022 = vpack.c.bf16 %v1941, %v1936
      %v2023 = vpack.c.bf16 %v1951, %v1946
      %v2024 = vpack.c.bf16 %v1961, %v1956
      %v2025 = vpack.c.bf16 %v1971, %v1966
      %v2026 = vpack.c.bf16 %v1981, %v1976
      %v2027 = vpack.c.bf16 %v1991, %v1986
      %v2028 = vpack.c.bf16 %v2001, %v1996
      %v2029 = vpack.c.bf16 %v2011, %v2006
      %v2046 = vunpack.c.l.b16 %v2014
      %v2047 = vunpack.c.h.b16 %v2014
      %v2048 = vunpack.c.l.b16 %v2015
      %v2049 = vunpack.c.h.b16 %v2015
      %v2050 = vunpack.c.l.b16 %v2016
      %v2051 = vunpack.c.h.b16 %v2016
      %v2052 = vunpack.c.l.b16 %v2017
      %v2053 = vunpack.c.h.b16 %v2017
      %v2054 = vunpack.c.l.b16 %v2018
      %v2055 = vunpack.c.h.b16 %v2018
      %v2056 = vunpack.c.l.b16 %v2019
      %v2057 = vunpack.c.h.b16 %v2019
      %v2058 = vunpack.c.l.b16 %v2020
      %v2059 = vunpack.c.h.b16 %v2020
      %v2060 = vunpack.c.l.b16 %v2021
      %v2061 = vunpack.c.h.b16 %v2021
      %v2062 = vunpack.c.l.b16 %v2022
      %v2063 = vunpack.c.h.b16 %v2022
      %v2064 = vunpack.c.l.b16 %v2023
      %v2065 = vunpack.c.h.b16 %v2023
      %v2066 = vunpack.c.l.b16 %v2024
      %v2067 = vunpack.c.h.b16 %v2024
      %v2068 = vunpack.c.l.b16 %v2025
      %v2069 = vunpack.c.h.b16 %v2025
      %v2070 = vunpack.c.l.b16 %v2026
      %v2071 = vunpack.c.h.b16 %v2026
      %v2072 = vunpack.c.l.b16 %v2027
      %v2073 = vunpack.c.h.b16 %v2027
      %v2074 = vunpack.c.l.b16 %v2028
      %v2075 = vunpack.c.h.b16 %v2028
      %v2076 = vunpack.c.l.b16 %v2029
      %v2077 = vunpack.c.h.b16 %v2029
      %v2078 = vpack.c.b16 %v2046, %v2046
      %v2079 = vpack.c.b16 %v2047, %v2047
      %v2080 = vpack.c.b16 %v2048, %v2048
      %v2081 = vpack.c.b16 %v2049, %v2049
      %v2082 = vpack.c.b16 %v2050, %v2050
      %v2083 = vpack.c.b16 %v2051, %v2051
      %v2084 = vpack.c.b16 %v2052, %v2052
      %v2085 = vpack.c.b16 %v2053, %v2053
      %v2086 = vpack.c.b16 %v2054, %v2054
      %v2087 = vpack.c.b16 %v2055, %v2055
      %v2088 = vpack.c.b16 %v2056, %v2056
      %v2089 = vpack.c.b16 %v2057, %v2057
      %v2090 = vpack.c.b16 %v2058, %v2058
      %v2091 = vpack.c.b16 %v2059, %v2059
      %v2092 = vpack.c.b16 %v2060, %v2060
      %v2093 = vpack.c.b16 %v2061, %v2061
      %v2094 = vpack.c.b16 %v2062, %v2062
      %v2095 = vpack.c.b16 %v2063, %v2063
      %v2096 = vpack.c.b16 %v2064, %v2064
      %v2097 = vpack.c.b16 %v2065, %v2065
      %v2098 = vpack.c.b16 %v2066, %v2066
      %v2099 = vpack.c.b16 %v2067, %v2067
      %v2100 = vpack.c.b16 %v2068, %v2068
      %v2101 = vpack.c.b16 %v2069, %v2069
      %v2102 = vpack.c.b16 %v2070, %v2070
      %v2103 = vpack.c.b16 %v2071, %v2071
      %v2104 = vpack.c.b16 %v2072, %v2072
      %v2105 = vpack.c.b16 %v2073, %v2073
      %v2106 = vpack.c.b16 %v2074, %v2074
      %v2107 = vpack.c.b16 %v2075, %v2075
      %v2108 = vpack.c.b16 %v2076, %v2076
      %v2109 = vpack.c.b16 %v2077, %v2077
      %2142 = vst [vmem:[#allocation13] sm:$0xf] %v2078
      %2143 = vst [vmem:[#allocation13 + $0x4] sm:$0xf] %v2079
      %2144 = vst [vmem:[#allocation13 + $0x8] sm:$0xf] %v2080
      %2145 = vst [vmem:[#allocation13 + $0xc] sm:$0xf] %v2081
      %2146 = vst [vmem:[#allocation13 + $0x10] sm:$0xf] %v2082
      %2147 = vst [vmem:[#allocation13 + $0x14] sm:$0xf] %v2083
      %2148 = vst [vmem:[#allocation13 + $0x18] sm:$0xf] %v2084
      %2149 = vst [vmem:[#allocation13 + $0x1c] sm:$0xf] %v2085
      %2150 = vst [vmem:[#allocation13 + $0x20] sm:$0xf] %v2086
      %2151 = vst [vmem:[#allocation13 + $0x24] sm:$0xf] %v2087
      %2152 = vst [vmem:[#allocation13 + $0x28] sm:$0xf] %v2088
      %2153 = vst [vmem:[#allocation13 + $0x2c] sm:$0xf] %v2089
      %2154 = vst [vmem:[#allocation13 + $0x30] sm:$0xf] %v2090
      %2155 = vst [vmem:[#allocation13 + $0x34] sm:$0xf] %v2091
      %2156 = vst [vmem:[#allocation13 + $0x38] sm:$0xf] %v2092
      %2157 = vst [vmem:[#allocation13 + $0x3c] sm:$0xf] %v2093
      %2158 = vst [vmem:[#allocation13 + $0x40] sm:$0xf] %v2094
      %2159 = vst [vmem:[#allocation13 + $0x44] sm:$0xf] %v2095
      %2160 = vst [vmem:[#allocation13 + $0x48] sm:$0xf] %v2096
      %2161 = vst [vmem:[#allocation13 + $0x4c] sm:$0xf] %v2097
      %2162 = vst [vmem:[#allocation13 + $0x50] sm:$0xf] %v2098
      %2163 = vst [vmem:[#allocation13 + $0x54] sm:$0xf] %v2099
      %2164 = vst [vmem:[#allocation13 + $0x58] sm:$0xf] %v2100
      %2165 = vst [vmem:[#allocation13 + $0x5c] sm:$0xf] %v2101
      %2166 = vst [vmem:[#allocation13 + $0x60] sm:$0xf] %v2102
      %2167 = vst [vmem:[#allocation13 + $0x64] sm:$0xf] %v2103
      %2168 = vst [vmem:[#allocation13 + $0x68] sm:$0xf] %v2104
      %2169 = vst [vmem:[#allocation13 + $0x6c] sm:$0xf] %v2105
      %2170 = vst [vmem:[#allocation13 + $0x70] sm:$0xf] %v2106
      %2171 = vst [vmem:[#allocation13 + $0x74] sm:$0xf] %v2107
      %2172 = vst [vmem:[#allocation13 + $0x78] sm:$0xf] %v2108
      %2173 = vst [vmem:[#allocation13 + $0x7c] sm:$0xf] %v2109
    $region45: #{tpu_custom_call.1} parent=1 // pred_fallthru
      _
    // Predicated region
    $region46: #{tpu_custom_call.1} parent=1 // pred_check
      _
    $region47: #{tpu_custom_call.1} parent=1 // pred_check_branch
      %2175 = sbr.rel (0) target = $region49
    $region48: #{tpu_custom_call.1} parent=1 // pred_region
      %s2177 = ssub.s32 4096, 4096
      %2178 = vsyncadd [#allocation6], %s2177
      %s2179 = sshll.u32 [#allocation12], 4
      %s2180 = int_to_ptr.vmem [resolvable:$true] %s2179
      %2185 = dma.vmem_to_hbm [thread:$0]  %s2180, 4096, %s5, [#allocation6], 128, 128, 8
    $region49: #{tpu_custom_call.1} parent=1 // pred_fallthru
      _
    // Predicated region
    $region50: #{tpu_custom_call.1} parent=1 // pred_check
      _
    $region51: #{tpu_custom_call.1} parent=1 // pred_check_branch
      %2187 = sbr.rel (0) target = $region53
    $region52: #{tpu_custom_call.1} parent=1 // pred_region
      %s2189 = ssub.s32 2048, 2048
      %2190 = vsyncadd [#allocation14], %s2189
      %s2191 = sshll.u32 [#allocation13], 4
      %s2192 = int_to_ptr.vmem [resolvable:$true] %s2191
      %2197 = dma.vmem_to_hbm [thread:$0]  %s2192, 2048, %s6, [#allocation14], 64, 64, 4
    $region53: #{tpu_custom_call.1} parent=1 // pred_fallthru
      _
    // Predicated region
    $region54: #{tpu_custom_call.1} parent=1 // pred_check
      _
    $region55: #{tpu_custom_call.1} parent=1 // pred_check_branch
      %2199 = sbr.rel (0) target = $region57
    $region56: #{tpu_custom_call.1} parent=1 // pred_region
      _
    $region57: #{tpu_custom_call.1} parent=1 // pred_fallthru
      _
    // Predicated region
    $region58: #{tpu_custom_call.1} parent=1 // pred_check
      _
    $region59: #{tpu_custom_call.1} parent=1 // pred_check_branch
      %2201 = sbr.rel (0) target = $region61
    $region60: #{tpu_custom_call.1} parent=1 // pred_region
      %2202 = dma.done [#allocation6], 4096
    $region61: #{tpu_custom_call.1} parent=1 // pred_fallthru
      _
    // Predicated region
    $region62: #{tpu_custom_call.1} parent=1 // pred_check
      _
    $region63: #{tpu_custom_call.1} parent=1 // pred_check_branch
      %2204 = sbr.rel (0) target = $region65
    $region64: #{tpu_custom_call.1} parent=1 // pred_region
      %2205 = dma.done [#allocation14], 2048
    $region65: #{tpu_custom_call.1} parent=1 // pred_fallthru
      _
    // Predicated region
    $region66: #{tpu_custom_call.1} parent=1 // pred_check
      _
    $region67: #{tpu_custom_call.1} parent=1 // pred_check_branch
      %2207 = sbr.rel (0) target = $region69
    $region68: #{tpu_custom_call.1} parent=1 // pred_region
      _
    $region69: #{tpu_custom_call.1} parent=1 // pred_fallthru
      _
    %2208 = vsyncpa [#allocation5], 1
    %2209 = vsyncpa [#allocation8], 1
    %2210 = vsyncpa [#allocation11], 1
    %2211 = vsyncpa [#allocation6], 1
    %2212 = vsyncpa [#allocation14], 1

</llo_original>
